<compile_context>
chip_gen: v7x
topology: tpu7x:2x2x1
jax: 0.10.0
libtpu: 0.0.40
codegen_flags: <defaults>
</compile_context>

<pallas_src>
import functools

import jax
import jax.numpy as jnp
from jax import lax
from jax.experimental import pallas as pl
from jax.experimental.pallas import tpu as pltpu


# ---------------------------------------------------------------------------
# Fused Pallas kernel: full (step x num_layers) recurrence for one tile.
# ---------------------------------------------------------------------------
def fused_lstm_kernel(
    x_ref,        # (1, Ct, St)        input plane tile (same for every step)
    w_ref,        # (L, 11, Ct, St)    all weight planes for this tile
    out_ref,      # (E, 1, Ct, St)     x at each effective step
    h_out_ref,    # (1, Ct, St)        final h of the last layer
    c_out_ref,    # (1, Ct, St)        final c of the last layer
    h_st,         # scratch (L, Ct, St)
    c_st,         # scratch (L, Ct, St)
    *,
    num_layers,
    num_steps,
    eff_steps,    # static, sorted tuple of step indices written to out_ref
    unroll,
):
    # init_hidden(): zeros.
    h_st[...] = jnp.zeros_like(h_st)
    c_st[...] = jnp.zeros_like(c_st)

    if not eff_steps:
        # Dummy output slot: make its contents defined.
        out_ref[...] = jnp.zeros_like(out_ref)

    x0 = x_ref[0]  # (Ct, St) — x is reset to the input at every timestep.

    def sigmoid(z):
        # 1 EUP op instead of exp + reciprocal.
        return 0.5 * (jnp.tanh(0.5 * z) + 1.0)

    # Step-invariant layer-0 input products (x == x0 at every step).
    xi0 = w_ref[0, 0] * x0
    xf0 = w_ref[0, 2] * x0
    xc0 = w_ref[0, 4] * x0
    xo0 = w_ref[0, 6] * x0

    def one_step():
        x = x0
        for l in range(num_layers):
            h = h_st[l]
            c = c_st[l]
            if l == 0:
                pi, pf, pg, po = xi0, xf0, xc0, xo0
            else:
                pi = w_ref[l, 0] * x
                pf = w_ref[l, 2] * x
                pg = w_ref[l, 4] * x
                po = w_ref[l, 6] * x

            ci = sigmoid(pi + w_ref[l, 1] * h + c * w_ref[l, 8])
            cf = sigmoid(pf + w_ref[l, 3] * h + c * w_ref[l, 9])
            cc = cf * c + ci * jnp.tanh(pg + w_ref[l, 5] * h)
            co = sigmoid(po + w_ref[l, 7] * h + cc * w_ref[l, 10])
            ch = co * jnp.tanh(cc)

            h_st[l] = ch
            c_st[l] = cc
            x = ch

    def run_segment(lo, hi):
        n = hi - lo
        if n <= 0:
            return

        def body(s, carry):
            one_step()
            return carry

        lax.fori_loop(lo, hi, body, 0, unroll=max(1, min(unroll, n)))

    # Split the recurrence at the effective steps: run each segment, then
    # write the last layer's h unconditionally (no per-step compares).
    prev = 0
    for e_idx, step_val in enumerate(eff_steps):
        run_segment(prev, step_val + 1)
        out_ref[e_idx, 0] = h_st[num_layers - 1]
        prev = step_val + 1
    run_segment(prev, num_steps)

    # Final (x, new_c) of the module == last layer's (h, c) at the last step.
    h_out_ref[0] = h_st[num_layers - 1]
    c_out_ref[0] = c_st[num_layers - 1]


# ---------------------------------------------------------------------------
# Tiling / VMEM budgeting.
# ---------------------------------------------------------------------------
def _vmem_budgets():
    """(tile budget bytes, vmem_limit_bytes) per TPU generation."""
    cap = None
    try:
        info = pltpu.get_tpu_info()
        cap = getattr(info, "vmem_capacity_bytes", None)
    except Exception:
        cap = None
    if not cap:
        cap = 64 * 1024 * 1024  # conservative (v7x per-core VMEM)
    # Leave headroom for Mosaic's elementwise temporaries and I/O buffers.
    budget = int(cap * 0.45)
    vmem_limit = int(cap * 0.70)
    return budget, vmem_limit


def _choose_tiles(C, S, num_layers, num_eff, budget):
    """Pick (channel_tile, spatial_tile): layout-legal, as large as fits."""
    # Bytes per element position across all blocks + scratch (f32):
    #   x (2x buffered) + outs (2x) + h_out/c_out (2x) + weights (1x, Buffered(1))
    #   + h/c scratch.
    per_elem = 4 * (2 * (1 + num_eff + 2) + 11 * num_layers + 2 * num_layers)

    # Spatial (lane) tile: multiple of 128, or the full extent.
    if S % 128 == 0:
        st_cands = [128 * m for m in range(1, S // 128 + 1) if S % (128 * m) == 0]
    else:
        st_cands = [S]

    # Channel (sublane) tile: multiple of 8 dividing C, or the full extent.
    ct_cands = {C}
    if C % 8 == 0:
        ct_cands.update(8 * m for m in range(1, C // 8 + 1) if C % (8 * m) == 0)
    ct_cands = sorted(ct_cands)

    best = (ct_cands[0], st_cands[0])
    best_sz = 0
    for ct in ct_cands:
        for st in st_cands:
            sz = ct * st
            if per_elem * sz <= budget and sz > best_sz:
                best, best_sz = (ct, st), sz
    return best


# ---------------------------------------------------------------------------
# Wrapper: one fused pallas_call for the whole multi-layer / multi-step LSTM.
# ---------------------------------------------------------------------------
def lstm_forward(x_in, layer_weights, hidden_channels, step, effective_step):
    B, C, H, W = x_in.shape
    num_layers = len(hidden_channels)
    # The elementwise formulation requires every hidden size == input channels.
    assert all(hc == C for hc in hidden_channels), (
        "elementwise cell requires hidden_channels[i] == input channel count")
    for lw in layer_weights:
        assert len(lw) == 11
        for w in lw:
            assert w.shape == (1, C, H, W)

    S = H * W
    eff = [s for s in range(step) if s in effective_step]
    E = len(eff)
    E_alloc = max(E, 1)  # dummy slot (zeroed in-kernel) if no effective step

    # Lane-dense layout: flatten spatial dims.
    xr = x_in.reshape(B, C, S)
    # Stack weights into a single (L, 11, C, S) array (one DMA stream).
    w_all = jnp.stack(
        [jnp.stack([w[0] for w in lw], axis=0).reshape(11, C, S)
         for lw in layer_weights],
        axis=0,
    )

    budget, vmem_limit = _vmem_budgets()
    Ct, St = _choose_tiles(C, S, num_layers, E_alloc, budget)
    # Batch innermost: weight block index is constant along it -> no re-DMA.
    grid = (C // Ct, S // St, B)

    io_spec = pl.BlockSpec((1, Ct, St), lambda c, r, b: (b, c, r))
    # Single-buffer the weight slab: its index never changes along batch and
    # the second buffer would only waste VMEM (halves weight footprint).
    w_spec = pl.BlockSpec(
        (num_layers, 11, Ct, St),
        lambda c, r, b: (0, 0, c, r),
        pipeline_mode=pl.Buffered(1),
    )
    out_spec = pl.BlockSpec((E_alloc, 1, Ct, St), lambda c, r, b: (0, b, c, r))

    kernel = functools.partial(
        fused_lstm_kernel,
        num_layers=num_layers,
        num_steps=step,
        eff_steps=tuple(eff),
        unroll=4,
    )

    outs, h_last, c_last = pl.pallas_call(
        kernel,
        grid=grid,
        in_specs=[io_spec, w_spec],
        out_specs=(out_spec, io_spec, io_spec),
        out_shape=(
            jax.ShapeDtypeStruct((E_alloc, B, C, S), x_in.dtype),
            jax.ShapeDtypeStruct((B, C, S), x_in.dtype),
            jax.ShapeDtypeStruct((B, C, S), x_in.dtype),
        ),
        scratch_shapes=[
            pltpu.VMEM((num_layers, Ct, St), jnp.float32),
            pltpu.VMEM((num_layers, Ct, St), jnp.float32),
        ],
        compiler_params=pltpu.CompilerParams(
            # Every (c, r, b) tile is fully independent -> all parallel, so
            # v7x's second TensorCore gets work even when the channel/spatial
            # grid collapses to (1, 1).
            dimension_semantics=("parallel", "parallel", "parallel"),
            vmem_limit_bytes=vmem_limit,
        ),
    )(xr, w_all)

    outputs = [outs[e].reshape(B, C, H, W) for e in range(E)]
    return outputs, (h_last.reshape(B, C, H, W), c_last.reshape(B, C, H, W))


# ---------------------------------------------------------------------------
# Pure-JAX reference (mirrors the PyTorch module exactly, in f32).
# ---------------------------------------------------------------------------
def _cell_ref(x, h, c, w):
    (wxi, whi, wxf, whf, wxc, whc, wxo, who, wci, wcf, wco) = w
    ci = jax.nn.sigmoid(wxi * x + whi * h + c * wci)
    cf = jax.nn.sigmoid(wxf * x + whf * h + c * wcf)
    cc = cf * c + ci * jnp.tanh(wxc * x + whc * h)
    co = jax.nn.sigmoid(wxo * x + who * h + cc * wco)
    return co * jnp.tanh(cc), cc


def _lstm_ref(x_in, layer_weights, hidden_channels, step, effective_step):
    internal_state = []
    outputs = []
    new_c = None
    x = x_in
    for s in range(step):
        x = x_in
        for i in range(len(hidden_channels)):
            if s == 0:
                b, _, hh, ww = x.shape
                h0 = jnp.zeros((b, hidden_channels[i], hh, ww), dtype=x.dtype)
                c0 = jnp.zeros_like(h0)
                internal_state.append((h0, c0))
            h, c = internal_state[i]
            x, new_c = _cell_ref(x, h, c, layer_weights[i])
            internal_state[i] = (x, new_c)
        if s in effective_step:
            outputs.append(x)
    return outputs, (x, new_c)


def make_layer_weights(key, hidden, H, W, dtype=jnp.float32):
    """11 weight planes: Wxi, Whi, Wxf, Whf, Wxc, Whc, Wxo, Who, Wci, Wcf, Wco."""
    keys = jax.random.split(key, 11)
    return tuple(
        0.1 * jax.random.normal(k, (1, hidden, H, W), dtype=dtype) for k in keys
    )


if __name__ == "__main__":
    # Small shapes consistent with the module (original hard-codes 480x640;
    # we use 16x16 for the synthetic test).  hidden % 2 == 0 and hidden == Cin
    # (required by the elementwise formulation).
    B, Cin, H, W = 2, 4, 16, 16
    hidden_channels = [4, 4]
    step = 4
    effective_step = [1, 3]

    key = jax.random.PRNGKey(0)
    kx, kw0, kw1 = jax.random.split(key, 3)

    x = jax.random.normal(kx, (B, Cin, H, W), dtype=jnp.float32)
    layer_weights = [
        make_layer_weights(kw0, hidden_channels[0], H, W),
        make_layer_weights(kw1, hidden_channels[1], H, W),
    ]

    outputs, (h_last, c_last) = lstm_forward(
        x, layer_weights, hidden_channels, step, effective_step
    )
    jax.block_until_ready((outputs, h_last, c_last))

    # Sanity check against the pure-JAX reference.
    ref_outputs, (ref_h, ref_c) = _lstm_ref(
        x, layer_weights, hidden_channels, step, effective_step
    )
    assert len(outputs) == len(ref_outputs) == len(effective_step)
    for a, b in zip(outputs, ref_outputs):
        assert jnp.allclose(a, b, atol=1e-5, rtol=1e-5)
    assert jnp.allclose(h_last, ref_h, atol=1e-5, rtol=1e-5)
    assert jnp.allclose(c_last, ref_c, atol=1e-5, rtol=1e-5)

    print("KERNEL_OK")
</pallas_src>

<mosaic_0001>
module attributes {stable_mosaic.version = 11 : i64} {
  func.func @fused_lstm_kernel(%arg0: i32, %arg1: i32, %arg2: i32, %arg3: memref<1x4x256xf32, #tpu.memory_space<vmem>>, %arg4: memref<2x11x4x256xf32, #tpu.memory_space<vmem>>, %arg5: memref<2x1x4x256xf32, #tpu.memory_space<vmem>>, %arg6: memref<1x4x256xf32, #tpu.memory_space<vmem>>, %arg7: memref<1x4x256xf32, #tpu.memory_space<vmem>>, %arg8: memref<2x4x256xf32, #tpu.memory_space<vmem>>, %arg9: memref<2x4x256xf32, #tpu.memory_space<vmem>>) attributes {dimension_semantics = [#tpu.dimension_semantics<parallel>, #tpu.dimension_semantics<parallel>, #tpu.dimension_semantics<parallel>], iteration_bounds = array<i64: 1, 1, 2>, scalar_prefetch = 0 : i64, scratch_operands = 2 : i64, tpu.core_type = #tpu.core_type<tc>, window_params = [{transform_indices = @transform_0, window_bounds = array<i64: 1, 4, 256>}, {pipeline_mode = #tpu.pipeline_mode<synchronous>, transform_indices = @transform_1, window_bounds = array<i64: 2, 11, 4, 256>}, {transform_indices = @transform_2, window_bounds = array<i64: 2, 1, 4, 256>}, {transform_indices = @transform_3, window_bounds = array<i64: 1, 4, 256>}, {transform_indices = @transform_4, window_bounds = array<i64: 1, 4, 256>}]} {
    %cst = arith.constant 0.000000e+00 : f32
    %0 = vector.broadcast %cst : f32 to vector<2x4x256xf32>
    %c0 = arith.constant 0 : index
    %c0_0 = arith.constant 0 : index
    %c0_1 = arith.constant 0 : index
    %1 = vector.load %arg8[%c0, %c0_0, %c0_1] : memref<2x4x256xf32, #tpu.memory_space<vmem>>, vector<2x4x256xf32>
    tpu.vector_store %arg8[%c0, %c0_0, %c0_1], %0 {strides = array<i32>} : memref<2x4x256xf32, #tpu.memory_space<vmem>>, vector<2x4x256xf32>,
    %cst_2 = arith.constant 0.000000e+00 : f32
    %2 = vector.broadcast %cst_2 : f32 to vector<2x4x256xf32>
    %c0_3 = arith.constant 0 : index
    %c0_4 = arith.constant 0 : index
    %c0_5 = arith.constant 0 : index
    %3 = vector.load %arg9[%c0_3, %c0_4, %c0_5] : memref<2x4x256xf32, #tpu.memory_space<vmem>>, vector<2x4x256xf32>
    tpu.vector_store %arg9[%c0_3, %c0_4, %c0_5], %2 {strides = array<i32>} : memref<2x4x256xf32, #tpu.memory_space<vmem>>, vector<2x4x256xf32>,
    %c0_6 = arith.constant 0 : index
    %c0_7 = arith.constant 0 : index
    %c0_8 = arith.constant 0 : index
    %4 = vector.load %arg3[%c0_6, %c0_7, %c0_8] : memref<1x4x256xf32, #tpu.memory_space<vmem>>, vector<1x4x256xf32>
    %5 = vector.shape_cast %4 : vector<1x4x256xf32> to vector<4x256xf32>
    %c0_9 = arith.constant 0 : index
    %c0_10 = arith.constant 0 : index
    %c0_11 = arith.constant 0 : index
    %c0_12 = arith.constant 0 : index
    %6 = vector.load %arg4[%c0_9, %c0_10, %c0_11, %c0_12] : memref<2x11x4x256xf32, #tpu.memory_space<vmem>>, vector<1x1x4x256xf32>
    %7 = vector.shape_cast %6 : vector<1x1x4x256xf32> to vector<4x256xf32>
    %8 = arith.mulf %7, %5 : vector<4x256xf32>
    %c0_13 = arith.constant 0 : index
    %c2 = arith.constant 2 : index
    %c0_14 = arith.constant 0 : index
    %c0_15 = arith.constant 0 : index
    %9 = vector.load %arg4[%c0_13, %c2, %c0_14, %c0_15] : memref<2x11x4x256xf32, #tpu.memory_space<vmem>>, vector<1x1x4x256xf32>
    %10 = vector.shape_cast %9 : vector<1x1x4x256xf32> to vector<4x256xf32>
    %11 = arith.mulf %10, %5 : vector<4x256xf32>
    %c0_16 = arith.constant 0 : index
    %c4 = arith.constant 4 : index
    %c0_17 = arith.constant 0 : index
    %c0_18 = arith.constant 0 : index
    %12 = vector.load %arg4[%c0_16, %c4, %c0_17, %c0_18] : memref<2x11x4x256xf32, #tpu.memory_space<vmem>>, vector<1x1x4x256xf32>
    %13 = vector.shape_cast %12 : vector<1x1x4x256xf32> to vector<4x256xf32>
    %14 = arith.mulf %13, %5 : vector<4x256xf32>
    %c0_19 = arith.constant 0 : index
    %c6 = arith.constant 6 : index
    %c0_20 = arith.constant 0 : index
    %c0_21 = arith.constant 0 : index
    %15 = vector.load %arg4[%c0_19, %c6, %c0_20, %c0_21] : memref<2x11x4x256xf32, #tpu.memory_space<vmem>>, vector<1x1x4x256xf32>
    %16 = vector.shape_cast %15 : vector<1x1x4x256xf32> to vector<4x256xf32>
    %17 = arith.mulf %16, %5 : vector<4x256xf32>
    %c0_i32 = arith.constant 0 : i32
    %c0_22 = arith.constant 0 : index
    %c0_23 = arith.constant 0 : index
    %c0_24 = arith.constant 0 : index
    %18 = vector.load %arg8[%c0_22, %c0_23, %c0_24] : memref<2x4x256xf32, #tpu.memory_space<vmem>>, vector<1x4x256xf32>
    %19 = vector.shape_cast %18 : vector<1x4x256xf32> to vector<4x256xf32>
    %c0_25 = arith.constant 0 : index
    %c0_26 = arith.constant 0 : index
    %c0_27 = arith.constant 0 : index
    %20 = vector.load %arg9[%c0_25, %c0_26, %c0_27] : memref<2x4x256xf32, #tpu.memory_space<vmem>>, vector<1x4x256xf32>
    %21 = vector.shape_cast %20 : vector<1x4x256xf32> to vector<4x256xf32>
    %c0_28 = arith.constant 0 : index
    %c1 = arith.constant 1 : index
    %c0_29 = arith.constant 0 : index
    %c0_30 = arith.constant 0 : index
    %22 = vector.load %arg4[%c0_28, %c1, %c0_29, %c0_30] : memref<2x11x4x256xf32, #tpu.memory_space<vmem>>, vector<1x1x4x256xf32>
    %23 = vector.shape_cast %22 : vector<1x1x4x256xf32> to vector<4x256xf32>
    %24 = arith.mulf %23, %19 : vector<4x256xf32>
    %25 = arith.addf %8, %24 : vector<4x256xf32>
    %c0_31 = arith.constant 0 : index
    %c8 = arith.constant 8 : index
    %c0_32 = arith.constant 0 : index
    %c0_33 = arith.constant 0 : index
    %26 = vector.load %arg4[%c0_31, %c8, %c0_32, %c0_33] : memref<2x11x4x256xf32, #tpu.memory_space<vmem>>, vector<1x1x4x256xf32>
    %27 = vector.shape_cast %26 : vector<1x1x4x256xf32> to vector<4x256xf32>
    %28 = arith.mulf %21, %27 : vector<4x256xf32>
    %29 = arith.addf %25, %28 : vector<4x256xf32>
    %cst_34 = arith.constant 5.000000e-01 : f32
    %30 = vector.broadcast %cst_34 : f32 to vector<4x256xf32>
    %31 = arith.mulf %30, %29 : vector<4x256xf32>
    %32 = math.tanh %31 : vector<4x256xf32>
    %cst_35 = arith.constant 1.000000e+00 : f32
    %33 = vector.broadcast %cst_35 : f32 to vector<4x256xf32>
    %34 = arith.addf %32, %33 : vector<4x256xf32>
    %cst_36 = arith.constant 5.000000e-01 : f32
    %35 = vector.broadcast %cst_36 : f32 to vector<4x256xf32>
    %36 = arith.mulf %35, %34 : vector<4x256xf32>
    %c0_37 = arith.constant 0 : index
    %c3 = arith.constant 3 : index
    %c0_38 = arith.constant 0 : index
    %c0_39 = arith.constant 0 : index
    %37 = vector.load %arg4[%c0_37, %c3, %c0_38, %c0_39] : memref<2x11x4x256xf32, #tpu.memory_space<vmem>>, vector<1x1x4x256xf32>
    %38 = vector.shape_cast %37 : vector<1x1x4x256xf32> to vector<4x256xf32>
    %39 = arith.mulf %38, %19 : vector<4x256xf32>
    %40 = arith.addf %11, %39 : vector<4x256xf32>
    %c0_40 = arith.constant 0 : index
    %c9 = arith.constant 9 : index
    %c0_41 = arith.constant 0 : index
    %c0_42 = arith.constant 0 : index
    %41 = vector.load %arg4[%c0_40, %c9, %c0_41, %c0_42] : memref<2x11x4x256xf32, #tpu.memory_space<vmem>>, vector<1x1x4x256xf32>
    %42 = vector.shape_cast %41 : vector<1x1x4x256xf32> to vector<4x256xf32>
    %43 = arith.mulf %21, %42 : vector<4x256xf32>
    %44 = arith.addf %40, %43 : vector<4x256xf32>
    %cst_43 = arith.constant 5.000000e-01 : f32
    %45 = vector.broadcast %cst_43 : f32 to vector<4x256xf32>
    %46 = arith.mulf %45, %44 : vector<4x256xf32>
    %47 = math.tanh %46 : vector<4x256xf32>
    %cst_44 = arith.constant 1.000000e+00 : f32
    %48 = vector.broadcast %cst_44 : f32 to vector<4x256xf32>
    %49 = arith.addf %47, %48 : vector<4x256xf32>
    %cst_45 = arith.constant 5.000000e-01 : f32
    %50 = vector.broadcast %cst_45 : f32 to vector<4x256xf32>
    %51 = arith.mulf %50, %49 : vector<4x256xf32>
    %52 = arith.mulf %51, %21 : vector<4x256xf32>
    %c0_46 = arith.constant 0 : index
    %c5 = arith.constant 5 : index
    %c0_47 = arith.constant 0 : index
    %c0_48 = arith.constant 0 : index
    %53 = vector.load %arg4[%c0_46, %c5, %c0_47, %c0_48] : memref<2x11x4x256xf32, #tpu.memory_space<vmem>>, vector<1x1x4x256xf32>
    %54 = vector.shape_cast %53 : vector<1x1x4x256xf32> to vector<4x256xf32>
    %55 = arith.mulf %54, %19 : vector<4x256xf32>
    %56 = arith.addf %14, %55 : vector<4x256xf32>
    %57 = math.tanh %56 : vector<4x256xf32>
    %58 = arith.mulf %36, %57 : vector<4x256xf32>
    %59 = arith.addf %52, %58 : vector<4x256xf32>
    %c0_49 = arith.constant 0 : index
    %c7 = arith.constant 7 : index
    %c0_50 = arith.constant 0 : index
    %c0_51 = arith.constant 0 : index
    %60 = vector.load %arg4[%c0_49, %c7, %c0_50, %c0_51] : memref<2x11x4x256xf32, #tpu.memory_space<vmem>>, vector<1x1x4x256xf32>
    %61 = vector.shape_cast %60 : vector<1x1x4x256xf32> to vector<4x256xf32>
    %62 = arith.mulf %61, %19 : vector<4x256xf32>
    %63 = arith.addf %17, %62 : vector<4x256xf32>
    %c0_52 = arith.constant 0 : index
    %c10 = arith.constant 10 : index
    %c0_53 = arith.constant 0 : index
    %c0_54 = arith.constant 0 : index
    %64 = vector.load %arg4[%c0_52, %c10, %c0_53, %c0_54] : memref<2x11x4x256xf32, #tpu.memory_space<vmem>>, vector<1x1x4x256xf32>
    %65 = vector.shape_cast %64 : vector<1x1x4x256xf32> to vector<4x256xf32>
    %66 = arith.mulf %59, %65 : vector<4x256xf32>
    %67 = arith.addf %63, %66 : vector<4x256xf32>
    %cst_55 = arith.constant 5.000000e-01 : f32
    %68 = vector.broadcast %cst_55 : f32 to vector<4x256xf32>
    %69 = arith.mulf %68, %67 : vector<4x256xf32>
    %70 = math.tanh %69 : vector<4x256xf32>
    %cst_56 = arith.constant 1.000000e+00 : f32
    %71 = vector.broadcast %cst_56 : f32 to vector<4x256xf32>
    %72 = arith.addf %70, %71 : vector<4x256xf32>
    %cst_57 = arith.constant 5.000000e-01 : f32
    %73 = vector.broadcast %cst_57 : f32 to vector<4x256xf32>
    %74 = arith.mulf %73, %72 : vector<4x256xf32>
    %75 = math.tanh %59 : vector<4x256xf32>
    %76 = arith.mulf %74, %75 : vector<4x256xf32>
    %c0_58 = arith.constant 0 : index
    %c0_59 = arith.constant 0 : index
    %c0_60 = arith.constant 0 : index
    %77 = vector.load %arg8[%c0_58, %c0_59, %c0_60] : memref<2x4x256xf32, #tpu.memory_space<vmem>>, vector<1x4x256xf32>
    %78 = vector.shape_cast %77 : vector<1x4x256xf32> to vector<4x256xf32>
    %79 = vector.shape_cast %76 : vector<4x256xf32> to vector<1x4x256xf32>
    tpu.vector_store %arg8[%c0_58, %c0_59, %c0_60], %79 {strides = array<i32>} : memref<2x4x256xf32, #tpu.memory_space<vmem>>, vector<1x4x256xf32>,
    %c0_61 = arith.constant 0 : index
    %c0_62 = arith.constant 0 : index
    %c0_63 = arith.constant 0 : index
    %80 = vector.load %arg9[%c0_61, %c0_62, %c0_63] : memref<2x4x256xf32, #tpu.memory_space<vmem>>, vector<1x4x256xf32>
    %81 = vector.shape_cast %80 : vector<1x4x256xf32> to vector<4x256xf32>
    %82 = vector.shape_cast %59 : vector<4x256xf32> to vector<1x4x256xf32>
    tpu.vector_store %arg9[%c0_61, %c0_62, %c0_63], %82 {strides = array<i32>} : memref<2x4x256xf32, #tpu.memory_space<vmem>>, vector<1x4x256xf32>,
    %c1_64 = arith.constant 1 : index
    %c0_65 = arith.constant 0 : index
    %c0_66 = arith.constant 0 : index
    %83 = vector.load %arg8[%c1_64, %c0_65, %c0_66] : memref<2x4x256xf32, #tpu.memory_space<vmem>>, vector<1x4x256xf32>
    %84 = vector.shape_cast %83 : vector<1x4x256xf32> to vector<4x256xf32>
    %c1_67 = arith.constant 1 : index
    %c0_68 = arith.constant 0 : index
    %c0_69 = arith.constant 0 : index
    %85 = vector.load %arg9[%c1_67, %c0_68, %c0_69] : memref<2x4x256xf32, #tpu.memory_space<vmem>>, vector<1x4x256xf32>
    %86 = vector.shape_cast %85 : vector<1x4x256xf32> to vector<4x256xf32>
    %c1_70 = arith.constant 1 : index
    %c0_71 = arith.constant 0 : index
    %c0_72 = arith.constant 0 : index
    %c0_73 = arith.constant 0 : index
    %87 = vector.load %arg4[%c1_70, %c0_71, %c0_72, %c0_73] : memref<2x11x4x256xf32, #tpu.memory_space<vmem>>, vector<1x1x4x256xf32>
    %88 = vector.shape_cast %87 : vector<1x1x4x256xf32> to vector<4x256xf32>
    %89 = arith.mulf %88, %76 : vector<4x256xf32>
    %c1_74 = arith.constant 1 : index
    %c2_75 = arith.constant 2 : index
    %c0_76 = arith.constant 0 : index
    %c0_77 = arith.constant 0 : index
    %90 = vector.load %arg4[%c1_74, %c2_75, %c0_76, %c0_77] : memref<2x11x4x256xf32, #tpu.memory_space<vmem>>, vector<1x1x4x256xf32>
    %91 = vector.shape_cast %90 : vector<1x1x4x256xf32> to vector<4x256xf32>
    %92 = arith.mulf %91, %76 : vector<4x256xf32>
    %c1_78 = arith.constant 1 : index
    %c4_79 = arith.constant 4 : index
    %c0_80 = arith.constant 0 : index
    %c0_81 = arith.constant 0 : index
    %93 = vector.load %arg4[%c1_78, %c4_79, %c0_80, %c0_81] : memref<2x11x4x256xf32, #tpu.memory_space<vmem>>, vector<1x1x4x256xf32>
    %94 = vector.shape_cast %93 : vector<1x1x4x256xf32> to vector<4x256xf32>
    %95 = arith.mulf %94, %76 : vector<4x256xf32>
    %c1_82 = arith.constant 1 : index
    %c6_83 = arith.constant 6 : index
    %c0_84 = arith.constant 0 : index
    %c0_85 = arith.constant 0 : index
    %96 = vector.load %arg4[%c1_82, %c6_83, %c0_84, %c0_85] : memref<2x11x4x256xf32, #tpu.memory_space<vmem>>, vector<1x1x4x256xf32>
    %97 = vector.shape_cast %96 : vector<1x1x4x256xf32> to vector<4x256xf32>
    %98 = arith.mulf %97, %76 : vector<4x256xf32>
    %c1_86 = arith.constant 1 : index
    %c1_87 = arith.constant 1 : index
    %c0_88 = arith.constant 0 : index
    %c0_89 = arith.constant 0 : index
    %99 = vector.load %arg4[%c1_86, %c1_87, %c0_88, %c0_89] : memref<2x11x4x256xf32, #tpu.memory_space<vmem>>, vector<1x1x4x256xf32>
    %100 = vector.shape_cast %99 : vector<1x1x4x256xf32> to vector<4x256xf32>
    %101 = arith.mulf %100, %84 : vector<4x256xf32>
    %102 = arith.addf %89, %101 : vector<4x256xf32>
    %c1_90 = arith.constant 1 : index
    %c8_91 = arith.constant 8 : index
    %c0_92 = arith.constant 0 : index
    %c0_93 = arith.constant 0 : index
    %103 = vector.load %arg4[%c1_90, %c8_91, %c0_92, %c0_93] : memref<2x11x4x256xf32, #tpu.memory_space<vmem>>, vector<1x1x4x256xf32>
    %104 = vector.shape_cast %103 : vector<1x1x4x256xf32> to vector<4x256xf32>
    %105 = arith.mulf %86, %104 : vector<4x256xf32>
    %106 = arith.addf %102, %105 : vector<4x256xf32>
    %cst_94 = arith.constant 5.000000e-01 : f32
    %107 = vector.broadcast %cst_94 : f32 to vector<4x256xf32>
    %108 = arith.mulf %107, %106 : vector<4x256xf32>
    %109 = math.tanh %108 : vector<4x256xf32>
    %cst_95 = arith.constant 1.000000e+00 : f32
    %110 = vector.broadcast %cst_95 : f32 to vector<4x256xf32>
    %111 = arith.addf %109, %110 : vector<4x256xf32>
    %cst_96 = arith.constant 5.000000e-01 : f32
    %112 = vector.broadcast %cst_96 : f32 to vector<4x256xf32>
    %113 = arith.mulf %112, %111 : vector<4x256xf32>
    %c1_97 = arith.constant 1 : index
    %c3_98 = arith.constant 3 : index
    %c0_99 = arith.constant 0 : index
    %c0_100 = arith.constant 0 : index
    %114 = vector.load %arg4[%c1_97, %c3_98, %c0_99, %c0_100] : memref<2x11x4x256xf32, #tpu.memory_space<vmem>>, vector<1x1x4x256xf32>
    %115 = vector.shape_cast %114 : vector<1x1x4x256xf32> to vector<4x256xf32>
    %116 = arith.mulf %115, %84 : vector<4x256xf32>
    %117 = arith.addf %92, %116 : vector<4x256xf32>
    %c1_101 = arith.constant 1 : index
    %c9_102 = arith.constant 9 : index
    %c0_103 = arith.constant 0 : index
    %c0_104 = arith.constant 0 : index
    %118 = vector.load %arg4[%c1_101, %c9_102, %c0_103, %c0_104] : memref<2x11x4x256xf32, #tpu.memory_space<vmem>>, vector<1x1x4x256xf32>
    %119 = vector.shape_cast %118 : vector<1x1x4x256xf32> to vector<4x256xf32>
    %120 = arith.mulf %86, %119 : vector<4x256xf32>
    %121 = arith.addf %117, %120 : vector<4x256xf32>
    %cst_105 = arith.constant 5.000000e-01 : f32
    %122 = vector.broadcast %cst_105 : f32 to vector<4x256xf32>
    %123 = arith.mulf %122, %121 : vector<4x256xf32>
    %124 = math.tanh %123 : vector<4x256xf32>
    %cst_106 = arith.constant 1.000000e+00 : f32
    %125 = vector.broadcast %cst_106 : f32 to vector<4x256xf32>
    %126 = arith.addf %124, %125 : vector<4x256xf32>
    %cst_107 = arith.constant 5.000000e-01 : f32
    %127 = vector.broadcast %cst_107 : f32 to vector<4x256xf32>
    %128 = arith.mulf %127, %126 : vector<4x256xf32>
    %129 = arith.mulf %128, %86 : vector<4x256xf32>
    %c1_108 = arith.constant 1 : index
    %c5_109 = arith.constant 5 : index
    %c0_110 = arith.constant 0 : index
    %c0_111 = arith.constant 0 : index
    %130 = vector.load %arg4[%c1_108, %c5_109, %c0_110, %c0_111] : memref<2x11x4x256xf32, #tpu.memory_space<vmem>>, vector<1x1x4x256xf32>
    %131 = vector.shape_cast %130 : vector<1x1x4x256xf32> to vector<4x256xf32>
    %132 = arith.mulf %131, %84 : vector<4x256xf32>
    %133 = arith.addf %95, %132 : vector<4x256xf32>
    %134 = math.tanh %133 : vector<4x256xf32>
    %135 = arith.mulf %113, %134 : vector<4x256xf32>
    %136 = arith.addf %129, %135 : vector<4x256xf32>
    %c1_112 = arith.constant 1 : index
    %c7_113 = arith.constant 7 : index
    %c0_114 = arith.constant 0 : index
    %c0_115 = arith.constant 0 : index
    %137 = vector.load %arg4[%c1_112, %c7_113, %c0_114, %c0_115] : memref<2x11x4x256xf32, #tpu.memory_space<vmem>>, vector<1x1x4x256xf32>
    %138 = vector.shape_cast %137 : vector<1x1x4x256xf32> to vector<4x256xf32>
    %139 = arith.mulf %138, %84 : vector<4x256xf32>
    %140 = arith.addf %98, %139 : vector<4x256xf32>
    %c1_116 = arith.constant 1 : index
    %c10_117 = arith.constant 10 : index
    %c0_118 = arith.constant 0 : index
    %c0_119 = arith.constant 0 : index
    %141 = vector.load %arg4[%c1_116, %c10_117, %c0_118, %c0_119] : memref<2x11x4x256xf32, #tpu.memory_space<vmem>>, vector<1x1x4x256xf32>
    %142 = vector.shape_cast %141 : vector<1x1x4x256xf32> to vector<4x256xf32>
    %143 = arith.mulf %136, %142 : vector<4x256xf32>
    %144 = arith.addf %140, %143 : vector<4x256xf32>
    %cst_120 = arith.constant 5.000000e-01 : f32
    %145 = vector.broadcast %cst_120 : f32 to vector<4x256xf32>
    %146 = arith.mulf %145, %144 : vector<4x256xf32>
    %147 = math.tanh %146 : vector<4x256xf32>
    %cst_121 = arith.constant 1.000000e+00 : f32
    %148 = vector.broadcast %cst_121 : f32 to vector<4x256xf32>
    %149 = arith.addf %147, %148 : vector<4x256xf32>
    %cst_122 = arith.constant 5.000000e-01 : f32
    %150 = vector.broadcast %cst_122 : f32 to vector<4x256xf32>
    %151 = arith.mulf %150, %149 : vector<4x256xf32>
    %152 = math.tanh %136 : vector<4x256xf32>
    %153 = arith.mulf %151, %152 : vector<4x256xf32>
    %c1_123 = arith.constant 1 : index
    %c0_124 = arith.constant 0 : index
    %c0_125 = arith.constant 0 : index
    %154 = vector.load %arg8[%c1_123, %c0_124, %c0_125] : memref<2x4x256xf32, #tpu.memory_space<vmem>>, vector<1x4x256xf32>
    %155 = vector.shape_cast %154 : vector<1x4x256xf32> to vector<4x256xf32>
    %156 = vector.shape_cast %153 : vector<4x256xf32> to vector<1x4x256xf32>
    tpu.vector_store %arg8[%c1_123, %c0_124, %c0_125], %156 {strides = array<i32>} : memref<2x4x256xf32, #tpu.memory_space<vmem>>, vector<1x4x256xf32>,
    %c1_126 = arith.constant 1 : index
    %c0_127 = arith.constant 0 : index
    %c0_128 = arith.constant 0 : index
    %157 = vector.load %arg9[%c1_126, %c0_127, %c0_128] : memref<2x4x256xf32, #tpu.memory_space<vmem>>, vector<1x4x256xf32>
    %158 = vector.shape_cast %157 : vector<1x4x256xf32> to vector<4x256xf32>
    %159 = vector.shape_cast %136 : vector<4x256xf32> to vector<1x4x256xf32>
    tpu.vector_store %arg9[%c1_126, %c0_127, %c0_128], %159 {strides = array<i32>} : memref<2x4x256xf32, #tpu.memory_space<vmem>>, vector<1x4x256xf32>,
    %c1_i32 = arith.constant 1 : i32
    %c0_129 = arith.constant 0 : index
    %c0_130 = arith.constant 0 : index
    %c0_131 = arith.constant 0 : index
    %160 = vector.load %arg8[%c0_129, %c0_130, %c0_131] : memref<2x4x256xf32, #tpu.memory_space<vmem>>, vector<1x4x256xf32>
    %161 = vector.shape_cast %160 : vector<1x4x256xf32> to vector<4x256xf32>
    %c0_132 = arith.constant 0 : index
    %c0_133 = arith.constant 0 : index
    %c0_134 = arith.constant 0 : index
    %162 = vector.load %arg9[%c0_132, %c0_133, %c0_134] : memref<2x4x256xf32, #tpu.memory_space<vmem>>, vector<1x4x256xf32>
    %163 = vector.shape_cast %162 : vector<1x4x256xf32> to vector<4x256xf32>
    %c0_135 = arith.constant 0 : index
    %c1_136 = arith.constant 1 : index
    %c0_137 = arith.constant 0 : index
    %c0_138 = arith.constant 0 : index
    %164 = vector.load %arg4[%c0_135, %c1_136, %c0_137, %c0_138] : memref<2x11x4x256xf32, #tpu.memory_space<vmem>>, vector<1x1x4x256xf32>
    %165 = vector.shape_cast %164 : vector<1x1x4x256xf32> to vector<4x256xf32>
    %166 = arith.mulf %165, %161 : vector<4x256xf32>
    %167 = arith.addf %8, %166 : vector<4x256xf32>
    %c0_139 = arith.constant 0 : index
    %c8_140 = arith.constant 8 : index
    %c0_141 = arith.constant 0 : index
    %c0_142 = arith.constant 0 : index
    %168 = vector.load %arg4[%c0_139, %c8_140, %c0_141, %c0_142] : memref<2x11x4x256xf32, #tpu.memory_space<vmem>>, vector<1x1x4x256xf32>
    %169 = vector.shape_cast %168 : vector<1x1x4x256xf32> to vector<4x256xf32>
    %170 = arith.mulf %163, %169 : vector<4x256xf32>
    %171 = arith.addf %167, %170 : vector<4x256xf32>
    %cst_143 = arith.constant 5.000000e-01 : f32
    %172 = vector.broadcast %cst_143 : f32 to vector<4x256xf32>
    %173 = arith.mulf %172, %171 : vector<4x256xf32>
    %174 = math.tanh %173 : vector<4x256xf32>
    %cst_144 = arith.constant 1.000000e+00 : f32
    %175 = vector.broadcast %cst_144 : f32 to vector<4x256xf32>
    %176 = arith.addf %174, %175 : vector<4x256xf32>
    %cst_145 = arith.constant 5.000000e-01 : f32
    %177 = vector.broadcast %cst_145 : f32 to vector<4x256xf32>
    %178 = arith.mulf %177, %176 : vector<4x256xf32>
    %c0_146 = arith.constant 0 : index
    %c3_147 = arith.constant 3 : index
    %c0_148 = arith.constant 0 : index
    %c0_149 = arith.constant 0 : index
    %179 = vector.load %arg4[%c0_146, %c3_147, %c0_148, %c0_149] : memref<2x11x4x256xf32, #tpu.memory_space<vmem>>, vector<1x1x4x256xf32>
    %180 = vector.shape_cast %179 : vector<1x1x4x256xf32> to vector<4x256xf32>
    %181 = arith.mulf %180, %161 : vector<4x256xf32>
    %182 = arith.addf %11, %181 : vector<4x256xf32>
    %c0_150 = arith.constant 0 : index
    %c9_151 = arith.constant 9 : index
    %c0_152 = arith.constant 0 : index
    %c0_153 = arith.constant 0 : index
    %183 = vector.load %arg4[%c0_150, %c9_151, %c0_152, %c0_153] : memref<2x11x4x256xf32, #tpu.memory_space<vmem>>, vector<1x1x4x256xf32>
    %184 = vector.shape_cast %183 : vector<1x1x4x256xf32> to vector<4x256xf32>
    %185 = arith.mulf %163, %184 : vector<4x256xf32>
    %186 = arith.addf %182, %185 : vector<4x256xf32>
    %cst_154 = arith.constant 5.000000e-01 : f32
    %187 = vector.broadcast %cst_154 : f32 to vector<4x256xf32>
    %188 = arith.mulf %187, %186 : vector<4x256xf32>
    %189 = math.tanh %188 : vector<4x256xf32>
    %cst_155 = arith.constant 1.000000e+00 : f32
    %190 = vector.broadcast %cst_155 : f32 to vector<4x256xf32>
    %191 = arith.addf %189, %190 : vector<4x256xf32>
    %cst_156 = arith.constant 5.000000e-01 : f32
    %192 = vector.broadcast %cst_156 : f32 to vector<4x256xf32>
    %193 = arith.mulf %192, %191 : vector<4x256xf32>
    %194 = arith.mulf %193, %163 : vector<4x256xf32>
    %c0_157 = arith.constant 0 : index
    %c5_158 = arith.constant 5 : index
    %c0_159 = arith.constant 0 : index
    %c0_160 = arith.constant 0 : index
    %195 = vector.load %arg4[%c0_157, %c5_158, %c0_159, %c0_160] : memref<2x11x4x256xf32, #tpu.memory_space<vmem>>, vector<1x1x4x256xf32>
    %196 = vector.shape_cast %195 : vector<1x1x4x256xf32> to vector<4x256xf32>
    %197 = arith.mulf %196, %161 : vector<4x256xf32>
    %198 = arith.addf %14, %197 : vector<4x256xf32>
    %199 = math.tanh %198 : vector<4x256xf32>
    %200 = arith.mulf %178, %199 : vector<4x256xf32>
    %201 = arith.addf %194, %200 : vector<4x256xf32>
    %c0_161 = arith.constant 0 : index
    %c7_162 = arith.constant 7 : index
    %c0_163 = arith.constant 0 : index
    %c0_164 = arith.constant 0 : index
    %202 = vector.load %arg4[%c0_161, %c7_162, %c0_163, %c0_164] : memref<2x11x4x256xf32, #tpu.memory_space<vmem>>, vector<1x1x4x256xf32>
    %203 = vector.shape_cast %202 : vector<1x1x4x256xf32> to vector<4x256xf32>
    %204 = arith.mulf %203, %161 : vector<4x256xf32>
    %205 = arith.addf %17, %204 : vector<4x256xf32>
    %c0_165 = arith.constant 0 : index
    %c10_166 = arith.constant 10 : index
    %c0_167 = arith.constant 0 : index
    %c0_168 = arith.constant 0 : index
    %206 = vector.load %arg4[%c0_165, %c10_166, %c0_167, %c0_168] : memref<2x11x4x256xf32, #tpu.memory_space<vmem>>, vector<1x1x4x256xf32>
    %207 = vector.shape_cast %206 : vector<1x1x4x256xf32> to vector<4x256xf32>
    %208 = arith.mulf %201, %207 : vector<4x256xf32>
    %209 = arith.addf %205, %208 : vector<4x256xf32>
    %cst_169 = arith.constant 5.000000e-01 : f32
    %210 = vector.broadcast %cst_169 : f32 to vector<4x256xf32>
    %211 = arith.mulf %210, %209 : vector<4x256xf32>
    %212 = math.tanh %211 : vector<4x256xf32>
    %cst_170 = arith.constant 1.000000e+00 : f32
    %213 = vector.broadcast %cst_170 : f32 to vector<4x256xf32>
    %214 = arith.addf %212, %213 : vector<4x256xf32>
    %cst_171 = arith.constant 5.000000e-01 : f32
    %215 = vector.broadcast %cst_171 : f32 to vector<4x256xf32>
    %216 = arith.mulf %215, %214 : vector<4x256xf32>
    %217 = math.tanh %201 : vector<4x256xf32>
    %218 = arith.mulf %216, %217 : vector<4x256xf32>
    %c0_172 = arith.constant 0 : index
    %c0_173 = arith.constant 0 : index
    %c0_174 = arith.constant 0 : index
    %219 = vector.load %arg8[%c0_172, %c0_173, %c0_174] : memref<2x4x256xf32, #tpu.memory_space<vmem>>, vector<1x4x256xf32>
    %220 = vector.shape_cast %219 : vector<1x4x256xf32> to vector<4x256xf32>
    %221 = vector.shape_cast %218 : vector<4x256xf32> to vector<1x4x256xf32>
    tpu.vector_store %arg8[%c0_172, %c0_173, %c0_174], %221 {strides = array<i32>} : memref<2x4x256xf32, #tpu.memory_space<vmem>>, vector<1x4x256xf32>,
    %c0_175 = arith.constant 0 : index
    %c0_176 = arith.constant 0 : index
    %c0_177 = arith.constant 0 : index
    %222 = vector.load %arg9[%c0_175, %c0_176, %c0_177] : memref<2x4x256xf32, #tpu.memory_space<vmem>>, vector<1x4x256xf32>
    %223 = vector.shape_cast %222 : vector<1x4x256xf32> to vector<4x256xf32>
    %224 = vector.shape_cast %201 : vector<4x256xf32> to vector<1x4x256xf32>
    tpu.vector_store %arg9[%c0_175, %c0_176, %c0_177], %224 {strides = array<i32>} : memref<2x4x256xf32, #tpu.memory_space<vmem>>, vector<1x4x256xf32>,
    %c1_178 = arith.constant 1 : index
    %c0_179 = arith.constant 0 : index
    %c0_180 = arith.constant 0 : index
    %225 = vector.load %arg8[%c1_178, %c0_179, %c0_180] : memref<2x4x256xf32, #tpu.memory_space<vmem>>, vector<1x4x256xf32>
    %226 = vector.shape_cast %225 : vector<1x4x256xf32> to vector<4x256xf32>
    %c1_181 = arith.constant 1 : index
    %c0_182 = arith.constant 0 : index
    %c0_183 = arith.constant 0 : index
    %227 = vector.load %arg9[%c1_181, %c0_182, %c0_183] : memref<2x4x256xf32, #tpu.memory_space<vmem>>, vector<1x4x256xf32>
    %228 = vector.shape_cast %227 : vector<1x4x256xf32> to vector<4x256xf32>
    %c1_184 = arith.constant 1 : index
    %c0_185 = arith.constant 0 : index
    %c0_186 = arith.constant 0 : index
    %c0_187 = arith.constant 0 : index
    %229 = vector.load %arg4[%c1_184, %c0_185, %c0_186, %c0_187] : memref<2x11x4x256xf32, #tpu.memory_space<vmem>>, vector<1x1x4x256xf32>
    %230 = vector.shape_cast %229 : vector<1x1x4x256xf32> to vector<4x256xf32>
    %231 = arith.mulf %230, %218 : vector<4x256xf32>
    %c1_188 = arith.constant 1 : index
    %c2_189 = arith.constant 2 : index
    %c0_190 = arith.constant 0 : index
    %c0_191 = arith.constant 0 : index
    %232 = vector.load %arg4[%c1_188, %c2_189, %c0_190, %c0_191] : memref<2x11x4x256xf32, #tpu.memory_space<vmem>>, vector<1x1x4x256xf32>
    %233 = vector.shape_cast %232 : vector<1x1x4x256xf32> to vector<4x256xf32>
    %234 = arith.mulf %233, %218 : vector<4x256xf32>
    %c1_192 = arith.constant 1 : index
    %c4_193 = arith.constant 4 : index
    %c0_194 = arith.constant 0 : index
    %c0_195 = arith.constant 0 : index
    %235 = vector.load %arg4[%c1_192, %c4_193, %c0_194, %c0_195] : memref<2x11x4x256xf32, #tpu.memory_space<vmem>>, vector<1x1x4x256xf32>
    %236 = vector.shape_cast %235 : vector<1x1x4x256xf32> to vector<4x256xf32>
    %237 = arith.mulf %236, %218 : vector<4x256xf32>
    %c1_196 = arith.constant 1 : index
    %c6_197 = arith.constant 6 : index
    %c0_198 = arith.constant 0 : index
    %c0_199 = arith.constant 0 : index
    %238 = vector.load %arg4[%c1_196, %c6_197, %c0_198, %c0_199] : memref<2x11x4x256xf32, #tpu.memory_space<vmem>>, vector<1x1x4x256xf32>
    %239 = vector.shape_cast %238 : vector<1x1x4x256xf32> to vector<4x256xf32>
    %240 = arith.mulf %239, %218 : vector<4x256xf32>
    %c1_200 = arith.constant 1 : index
    %c1_201 = arith.constant 1 : index
    %c0_202 = arith.constant 0 : index
    %c0_203 = arith.constant 0 : index
    %241 = vector.load %arg4[%c1_200, %c1_201, %c0_202, %c0_203] : memref<2x11x4x256xf32, #tpu.memory_space<vmem>>, vector<1x1x4x256xf32>
    %242 = vector.shape_cast %241 : vector<1x1x4x256xf32> to vector<4x256xf32>
    %243 = arith.mulf %242, %226 : vector<4x256xf32>
    %244 = arith.addf %231, %243 : vector<4x256xf32>
    %c1_204 = arith.constant 1 : index
    %c8_205 = arith.constant 8 : index
    %c0_206 = arith.constant 0 : index
    %c0_207 = arith.constant 0 : index
    %245 = vector.load %arg4[%c1_204, %c8_205, %c0_206, %c0_207] : memref<2x11x4x256xf32, #tpu.memory_space<vmem>>, vector<1x1x4x256xf32>
    %246 = vector.shape_cast %245 : vector<1x1x4x256xf32> to vector<4x256xf32>
    %247 = arith.mulf %228, %246 : vector<4x256xf32>
    %248 = arith.addf %244, %247 : vector<4x256xf32>
    %cst_208 = arith.constant 5.000000e-01 : f32
    %249 = vector.broadcast %cst_208 : f32 to vector<4x256xf32>
    %250 = arith.mulf %249, %248 : vector<4x256xf32>
    %251 = math.tanh %250 : vector<4x256xf32>
    %cst_209 = arith.constant 1.000000e+00 : f32
    %252 = vector.broadcast %cst_209 : f32 to vector<4x256xf32>
    %253 = arith.addf %251, %252 : vector<4x256xf32>
    %cst_210 = arith.constant 5.000000e-01 : f32
    %254 = vector.broadcast %cst_210 : f32 to vector<4x256xf32>
    %255 = arith.mulf %254, %253 : vector<4x256xf32>
    %c1_211 = arith.constant 1 : index
    %c3_212 = arith.constant 3 : index
    %c0_213 = arith.constant 0 : index
    %c0_214 = arith.constant 0 : index
    %256 = vector.load %arg4[%c1_211, %c3_212, %c0_213, %c0_214] : memref<2x11x4x256xf32, #tpu.memory_space<vmem>>, vector<1x1x4x256xf32>
    %257 = vector.shape_cast %256 : vector<1x1x4x256xf32> to vector<4x256xf32>
    %258 = arith.mulf %257, %226 : vector<4x256xf32>
    %259 = arith.addf %234, %258 : vector<4x256xf32>
    %c1_215 = arith.constant 1 : index
    %c9_216 = arith.constant 9 : index
    %c0_217 = arith.constant 0 : index
    %c0_218 = arith.constant 0 : index
    %260 = vector.load %arg4[%c1_215, %c9_216, %c0_217, %c0_218] : memref<2x11x4x256xf32, #tpu.memory_space<vmem>>, vector<1x1x4x256xf32>
    %261 = vector.shape_cast %260 : vector<1x1x4x256xf32> to vector<4x256xf32>
    %262 = arith.mulf %228, %261 : vector<4x256xf32>
    %263 = arith.addf %259, %262 : vector<4x256xf32>
    %cst_219 = arith.constant 5.000000e-01 : f32
    %264 = vector.broadcast %cst_219 : f32 to vector<4x256xf32>
    %265 = arith.mulf %264, %263 : vector<4x256xf32>
    %266 = math.tanh %265 : vector<4x256xf32>
    %cst_220 = arith.constant 1.000000e+00 : f32
    %267 = vector.broadcast %cst_220 : f32 to vector<4x256xf32>
    %268 = arith.addf %266, %267 : vector<4x256xf32>
    %cst_221 = arith.constant 5.000000e-01 : f32
    %269 = vector.broadcast %cst_221 : f32 to vector<4x256xf32>
    %270 = arith.mulf %269, %268 : vector<4x256xf32>
    %271 = arith.mulf %270, %228 : vector<4x256xf32>
    %c1_222 = arith.constant 1 : index
    %c5_223 = arith.constant 5 : index
    %c0_224 = arith.constant 0 : index
    %c0_225 = arith.constant 0 : index
    %272 = vector.load %arg4[%c1_222, %c5_223, %c0_224, %c0_225] : memref<2x11x4x256xf32, #tpu.memory_space<vmem>>, vector<1x1x4x256xf32>
    %273 = vector.shape_cast %272 : vector<1x1x4x256xf32> to vector<4x256xf32>
    %274 = arith.mulf %273, %226 : vector<4x256xf32>
    %275 = arith.addf %237, %274 : vector<4x256xf32>
    %276 = math.tanh %275 : vector<4x256xf32>
    %277 = arith.mulf %255, %276 : vector<4x256xf32>
    %278 = arith.addf %271, %277 : vector<4x256xf32>
    %c1_226 = arith.constant 1 : index
    %c7_227 = arith.constant 7 : index
    %c0_228 = arith.constant 0 : index
    %c0_229 = arith.constant 0 : index
    %279 = vector.load %arg4[%c1_226, %c7_227, %c0_228, %c0_229] : memref<2x11x4x256xf32, #tpu.memory_space<vmem>>, vector<1x1x4x256xf32>
    %280 = vector.shape_cast %279 : vector<1x1x4x256xf32> to vector<4x256xf32>
    %281 = arith.mulf %280, %226 : vector<4x256xf32>
    %282 = arith.addf %240, %281 : vector<4x256xf32>
    %c1_230 = arith.constant 1 : index
    %c10_231 = arith.constant 10 : index
    %c0_232 = arith.constant 0 : index
    %c0_233 = arith.constant 0 : index
    %283 = vector.load %arg4[%c1_230, %c10_231, %c0_232, %c0_233] : memref<2x11x4x256xf32, #tpu.memory_space<vmem>>, vector<1x1x4x256xf32>
    %284 = vector.shape_cast %283 : vector<1x1x4x256xf32> to vector<4x256xf32>
    %285 = arith.mulf %278, %284 : vector<4x256xf32>
    %286 = arith.addf %282, %285 : vector<4x256xf32>
    %cst_234 = arith.constant 5.000000e-01 : f32
    %287 = vector.broadcast %cst_234 : f32 to vector<4x256xf32>
    %288 = arith.mulf %287, %286 : vector<4x256xf32>
    %289 = math.tanh %288 : vector<4x256xf32>
    %cst_235 = arith.constant 1.000000e+00 : f32
    %290 = vector.broadcast %cst_235 : f32 to vector<4x256xf32>
    %291 = arith.addf %289, %290 : vector<4x256xf32>
    %cst_236 = arith.constant 5.000000e-01 : f32
    %292 = vector.broadcast %cst_236 : f32 to vector<4x256xf32>
    %293 = arith.mulf %292, %291 : vector<4x256xf32>
    %294 = math.tanh %278 : vector<4x256xf32>
    %295 = arith.mulf %293, %294 : vector<4x256xf32>
    %c1_237 = arith.constant 1 : index
    %c0_238 = arith.constant 0 : index
    %c0_239 = arith.constant 0 : index
    %296 = vector.load %arg8[%c1_237, %c0_238, %c0_239] : memref<2x4x256xf32, #tpu.memory_space<vmem>>, vector<1x4x256xf32>
    %297 = vector.shape_cast %296 : vector<1x4x256xf32> to vector<4x256xf32>
    %298 = vector.shape_cast %295 : vector<4x256xf32> to vector<1x4x256xf32>
    tpu.vector_store %arg8[%c1_237, %c0_238, %c0_239], %298 {strides = array<i32>} : memref<2x4x256xf32, #tpu.memory_space<vmem>>, vector<1x4x256xf32>,
    %c1_240 = arith.constant 1 : index
    %c0_241 = arith.constant 0 : index
    %c0_242 = arith.constant 0 : index
    %299 = vector.load %arg9[%c1_240, %c0_241, %c0_242] : memref<2x4x256xf32, #tpu.memory_space<vmem>>, vector<1x4x256xf32>
    %300 = vector.shape_cast %299 : vector<1x4x256xf32> to vector<4x256xf32>
    %301 = vector.shape_cast %278 : vector<4x256xf32> to vector<1x4x256xf32>
    tpu.vector_store %arg9[%c1_240, %c0_241, %c0_242], %301 {strides = array<i32>} : memref<2x4x256xf32, #tpu.memory_space<vmem>>, vector<1x4x256xf32>,
    %c1_243 = arith.constant 1 : index
    %c0_244 = arith.constant 0 : index
    %c0_245 = arith.constant 0 : index
    %302 = vector.load %arg8[%c1_243, %c0_244, %c0_245] : memref<2x4x256xf32, #tpu.memory_space<vmem>>, vector<1x4x256xf32>
    %303 = vector.shape_cast %302 : vector<1x4x256xf32> to vector<4x256xf32>
    %c0_246 = arith.constant 0 : index
    %c0_247 = arith.constant 0 : index
    %c0_248 = arith.constant 0 : index
    %c0_249 = arith.constant 0 : index
    %304 = vector.load %arg5[%c0_246, %c0_247, %c0_248, %c0_249] : memref<2x1x4x256xf32, #tpu.memory_space<vmem>>, vector<1x1x4x256xf32>
    %305 = vector.shape_cast %304 : vector<1x1x4x256xf32> to vector<4x256xf32>
    %306 = vector.shape_cast %303 : vector<4x256xf32> to vector<1x1x4x256xf32>
    tpu.vector_store %arg5[%c0_246, %c0_247, %c0_248, %c0_249], %306 {strides = array<i32>} : memref<2x1x4x256xf32, #tpu.memory_space<vmem>>, vector<1x1x4x256xf32>,
    %c0_i32_250 = arith.constant 0 : i32
    %c0_251 = arith.constant 0 : index
    %c0_252 = arith.constant 0 : index
    %c0_253 = arith.constant 0 : index
    %307 = vector.load %arg8[%c0_251, %c0_252, %c0_253] : memref<2x4x256xf32, #tpu.memory_space<vmem>>, vector<1x4x256xf32>
    %308 = vector.shape_cast %307 : vector<1x4x256xf32> to vector<4x256xf32>
    %c0_254 = arith.constant 0 : index
    %c0_255 = arith.constant 0 : index
    %c0_256 = arith.constant 0 : index
    %309 = vector.load %arg9[%c0_254, %c0_255, %c0_256] : memref<2x4x256xf32, #tpu.memory_space<vmem>>, vector<1x4x256xf32>
    %310 = vector.shape_cast %309 : vector<1x4x256xf32> to vector<4x256xf32>
    %c0_257 = arith.constant 0 : index
    %c1_258 = arith.constant 1 : index
    %c0_259 = arith.constant 0 : index
    %c0_260 = arith.constant 0 : index
    %311 = vector.load %arg4[%c0_257, %c1_258, %c0_259, %c0_260] : memref<2x11x4x256xf32, #tpu.memory_space<vmem>>, vector<1x1x4x256xf32>
    %312 = vector.shape_cast %311 : vector<1x1x4x256xf32> to vector<4x256xf32>
    %313 = arith.mulf %312, %308 : vector<4x256xf32>
    %314 = arith.addf %8, %313 : vector<4x256xf32>
    %c0_261 = arith.constant 0 : index
    %c8_262 = arith.constant 8 : index
    %c0_263 = arith.constant 0 : index
    %c0_264 = arith.constant 0 : index
    %315 = vector.load %arg4[%c0_261, %c8_262, %c0_263, %c0_264] : memref<2x11x4x256xf32, #tpu.memory_space<vmem>>, vector<1x1x4x256xf32>
    %316 = vector.shape_cast %315 : vector<1x1x4x256xf32> to vector<4x256xf32>
    %317 = arith.mulf %310, %316 : vector<4x256xf32>
    %318 = arith.addf %314, %317 : vector<4x256xf32>
    %cst_265 = arith.constant 5.000000e-01 : f32
    %319 = vector.broadcast %cst_265 : f32 to vector<4x256xf32>
    %320 = arith.mulf %319, %318 : vector<4x256xf32>
    %321 = math.tanh %320 : vector<4x256xf32>
    %cst_266 = arith.constant 1.000000e+00 : f32
    %322 = vector.broadcast %cst_266 : f32 to vector<4x256xf32>
    %323 = arith.addf %321, %322 : vector<4x256xf32>
    %cst_267 = arith.constant 5.000000e-01 : f32
    %324 = vector.broadcast %cst_267 : f32 to vector<4x256xf32>
    %325 = arith.mulf %324, %323 : vector<4x256xf32>
    %c0_268 = arith.constant 0 : index
    %c3_269 = arith.constant 3 : index
    %c0_270 = arith.constant 0 : index
    %c0_271 = arith.constant 0 : index
    %326 = vector.load %arg4[%c0_268, %c3_269, %c0_270, %c0_271] : memref<2x11x4x256xf32, #tpu.memory_space<vmem>>, vector<1x1x4x256xf32>
    %327 = vector.shape_cast %326 : vector<1x1x4x256xf32> to vector<4x256xf32>
    %328 = arith.mulf %327, %308 : vector<4x256xf32>
    %329 = arith.addf %11, %328 : vector<4x256xf32>
    %c0_272 = arith.constant 0 : index
    %c9_273 = arith.constant 9 : index
    %c0_274 = arith.constant 0 : index
    %c0_275 = arith.constant 0 : index
    %330 = vector.load %arg4[%c0_272, %c9_273, %c0_274, %c0_275] : memref<2x11x4x256xf32, #tpu.memory_space<vmem>>, vector<1x1x4x256xf32>
    %331 = vector.shape_cast %330 : vector<1x1x4x256xf32> to vector<4x256xf32>
    %332 = arith.mulf %310, %331 : vector<4x256xf32>
    %333 = arith.addf %329, %332 : vector<4x256xf32>
    %cst_276 = arith.constant 5.000000e-01 : f32
    %334 = vector.broadcast %cst_276 : f32 to vector<4x256xf32>
    %335 = arith.mulf %334, %333 : vector<4x256xf32>
    %336 = math.tanh %335 : vector<4x256xf32>
    %cst_277 = arith.constant 1.000000e+00 : f32
    %337 = vector.broadcast %cst_277 : f32 to vector<4x256xf32>
    %338 = arith.addf %336, %337 : vector<4x256xf32>
    %cst_278 = arith.constant 5.000000e-01 : f32
    %339 = vector.broadcast %cst_278 : f32 to vector<4x256xf32>
    %340 = arith.mulf %339, %338 : vector<4x256xf32>
    %341 = arith.mulf %340, %310 : vector<4x256xf32>
    %c0_279 = arith.constant 0 : index
    %c5_280 = arith.constant 5 : index
    %c0_281 = arith.constant 0 : index
    %c0_282 = arith.constant 0 : index
    %342 = vector.load %arg4[%c0_279, %c5_280, %c0_281, %c0_282] : memref<2x11x4x256xf32, #tpu.memory_space<vmem>>, vector<1x1x4x256xf32>
    %343 = vector.shape_cast %342 : vector<1x1x4x256xf32> to vector<4x256xf32>
    %344 = arith.mulf %343, %308 : vector<4x256xf32>
    %345 = arith.addf %14, %344 : vector<4x256xf32>
    %346 = math.tanh %345 : vector<4x256xf32>
    %347 = arith.mulf %325, %346 : vector<4x256xf32>
    %348 = arith.addf %341, %347 : vector<4x256xf32>
    %c0_283 = arith.constant 0 : index
    %c7_284 = arith.constant 7 : index
    %c0_285 = arith.constant 0 : index
    %c0_286 = arith.constant 0 : index
    %349 = vector.load %arg4[%c0_283, %c7_284, %c0_285, %c0_286] : memref<2x11x4x256xf32, #tpu.memory_space<vmem>>, vector<1x1x4x256xf32>
    %350 = vector.shape_cast %349 : vector<1x1x4x256xf32> to vector<4x256xf32>
    %351 = arith.mulf %350, %308 : vector<4x256xf32>
    %352 = arith.addf %17, %351 : vector<4x256xf32>
    %c0_287 = arith.constant 0 : index
    %c10_288 = arith.constant 10 : index
    %c0_289 = arith.constant 0 : index
    %c0_290 = arith.constant 0 : index
    %353 = vector.load %arg4[%c0_287, %c10_288, %c0_289, %c0_290] : memref<2x11x4x256xf32, #tpu.memory_space<vmem>>, vector<1x1x4x256xf32>
    %354 = vector.shape_cast %353 : vector<1x1x4x256xf32> to vector<4x256xf32>
    %355 = arith.mulf %348, %354 : vector<4x256xf32>
    %356 = arith.addf %352, %355 : vector<4x256xf32>
    %cst_291 = arith.constant 5.000000e-01 : f32
    %357 = vector.broadcast %cst_291 : f32 to vector<4x256xf32>
    %358 = arith.mulf %357, %356 : vector<4x256xf32>
    %359 = math.tanh %358 : vector<4x256xf32>
    %cst_292 = arith.constant 1.000000e+00 : f32
    %360 = vector.broadcast %cst_292 : f32 to vector<4x256xf32>
    %361 = arith.addf %359, %360 : vector<4x256xf32>
    %cst_293 = arith.constant 5.000000e-01 : f32
    %362 = vector.broadcast %cst_293 : f32 to vector<4x256xf32>
    %363 = arith.mulf %362, %361 : vector<4x256xf32>
    %364 = math.tanh %348 : vector<4x256xf32>
    %365 = arith.mulf %363, %364 : vector<4x256xf32>
    %c0_294 = arith.constant 0 : index
    %c0_295 = arith.constant 0 : index
    %c0_296 = arith.constant 0 : index
    %366 = vector.load %arg8[%c0_294, %c0_295, %c0_296] : memref<2x4x256xf32, #tpu.memory_space<vmem>>, vector<1x4x256xf32>
    %367 = vector.shape_cast %366 : vector<1x4x256xf32> to vector<4x256xf32>
    %368 = vector.shape_cast %365 : vector<4x256xf32> to vector<1x4x256xf32>
    tpu.vector_store %arg8[%c0_294, %c0_295, %c0_296], %368 {strides = array<i32>} : memref<2x4x256xf32, #tpu.memory_space<vmem>>, vector<1x4x256xf32>,
    %c0_297 = arith.constant 0 : index
    %c0_298 = arith.constant 0 : index
    %c0_299 = arith.constant 0 : index
    %369 = vector.load %arg9[%c0_297, %c0_298, %c0_299] : memref<2x4x256xf32, #tpu.memory_space<vmem>>, vector<1x4x256xf32>
    %370 = vector.shape_cast %369 : vector<1x4x256xf32> to vector<4x256xf32>
    %371 = vector.shape_cast %348 : vector<4x256xf32> to vector<1x4x256xf32>
    tpu.vector_store %arg9[%c0_297, %c0_298, %c0_299], %371 {strides = array<i32>} : memref<2x4x256xf32, #tpu.memory_space<vmem>>, vector<1x4x256xf32>,
    %c1_300 = arith.constant 1 : index
    %c0_301 = arith.constant 0 : index
    %c0_302 = arith.constant 0 : index
    %372 = vector.load %arg8[%c1_300, %c0_301, %c0_302] : memref<2x4x256xf32, #tpu.memory_space<vmem>>, vector<1x4x256xf32>
    %373 = vector.shape_cast %372 : vector<1x4x256xf32> to vector<4x256xf32>
    %c1_303 = arith.constant 1 : index
    %c0_304 = arith.constant 0 : index
    %c0_305 = arith.constant 0 : index
    %374 = vector.load %arg9[%c1_303, %c0_304, %c0_305] : memref<2x4x256xf32, #tpu.memory_space<vmem>>, vector<1x4x256xf32>
    %375 = vector.shape_cast %374 : vector<1x4x256xf32> to vector<4x256xf32>
    %c1_306 = arith.constant 1 : index
    %c0_307 = arith.constant 0 : index
    %c0_308 = arith.constant 0 : index
    %c0_309 = arith.constant 0 : index
    %376 = vector.load %arg4[%c1_306, %c0_307, %c0_308, %c0_309] : memref<2x11x4x256xf32, #tpu.memory_space<vmem>>, vector<1x1x4x256xf32>
    %377 = vector.shape_cast %376 : vector<1x1x4x256xf32> to vector<4x256xf32>
    %378 = arith.mulf %377, %365 : vector<4x256xf32>
    %c1_310 = arith.constant 1 : index
    %c2_311 = arith.constant 2 : index
    %c0_312 = arith.constant 0 : index
    %c0_313 = arith.constant 0 : index
    %379 = vector.load %arg4[%c1_310, %c2_311, %c0_312, %c0_313] : memref<2x11x4x256xf32, #tpu.memory_space<vmem>>, vector<1x1x4x256xf32>
    %380 = vector.shape_cast %379 : vector<1x1x4x256xf32> to vector<4x256xf32>
    %381 = arith.mulf %380, %365 : vector<4x256xf32>
    %c1_314 = arith.constant 1 : index
    %c4_315 = arith.constant 4 : index
    %c0_316 = arith.constant 0 : index
    %c0_317 = arith.constant 0 : index
    %382 = vector.load %arg4[%c1_314, %c4_315, %c0_316, %c0_317] : memref<2x11x4x256xf32, #tpu.memory_space<vmem>>, vector<1x1x4x256xf32>
    %383 = vector.shape_cast %382 : vector<1x1x4x256xf32> to vector<4x256xf32>
    %384 = arith.mulf %383, %365 : vector<4x256xf32>
    %c1_318 = arith.constant 1 : index
    %c6_319 = arith.constant 6 : index
    %c0_320 = arith.constant 0 : index
    %c0_321 = arith.constant 0 : index
    %385 = vector.load %arg4[%c1_318, %c6_319, %c0_320, %c0_321] : memref<2x11x4x256xf32, #tpu.memory_space<vmem>>, vector<1x1x4x256xf32>
    %386 = vector.shape_cast %385 : vector<1x1x4x256xf32> to vector<4x256xf32>
    %387 = arith.mulf %386, %365 : vector<4x256xf32>
    %c1_322 = arith.constant 1 : index
    %c1_323 = arith.constant 1 : index
    %c0_324 = arith.constant 0 : index
    %c0_325 = arith.constant 0 : index
    %388 = vector.load %arg4[%c1_322, %c1_323, %c0_324, %c0_325] : memref<2x11x4x256xf32, #tpu.memory_space<vmem>>, vector<1x1x4x256xf32>
    %389 = vector.shape_cast %388 : vector<1x1x4x256xf32> to vector<4x256xf32>
    %390 = arith.mulf %389, %373 : vector<4x256xf32>
    %391 = arith.addf %378, %390 : vector<4x256xf32>
    %c1_326 = arith.constant 1 : index
    %c8_327 = arith.constant 8 : index
    %c0_328 = arith.constant 0 : index
    %c0_329 = arith.constant 0 : index
    %392 = vector.load %arg4[%c1_326, %c8_327, %c0_328, %c0_329] : memref<2x11x4x256xf32, #tpu.memory_space<vmem>>, vector<1x1x4x256xf32>
    %393 = vector.shape_cast %392 : vector<1x1x4x256xf32> to vector<4x256xf32>
    %394 = arith.mulf %375, %393 : vector<4x256xf32>
    %395 = arith.addf %391, %394 : vector<4x256xf32>
    %cst_330 = arith.constant 5.000000e-01 : f32
    %396 = vector.broadcast %cst_330 : f32 to vector<4x256xf32>
    %397 = arith.mulf %396, %395 : vector<4x256xf32>
    %398 = math.tanh %397 : vector<4x256xf32>
    %cst_331 = arith.constant 1.000000e+00 : f32
    %399 = vector.broadcast %cst_331 : f32 to vector<4x256xf32>
    %400 = arith.addf %398, %399 : vector<4x256xf32>
    %cst_332 = arith.constant 5.000000e-01 : f32
    %401 = vector.broadcast %cst_332 : f32 to vector<4x256xf32>
    %402 = arith.mulf %401, %400 : vector<4x256xf32>
    %c1_333 = arith.constant 1 : index
    %c3_334 = arith.constant 3 : index
    %c0_335 = arith.constant 0 : index
    %c0_336 = arith.constant 0 : index
    %403 = vector.load %arg4[%c1_333, %c3_334, %c0_335, %c0_336] : memref<2x11x4x256xf32, #tpu.memory_space<vmem>>, vector<1x1x4x256xf32>
    %404 = vector.shape_cast %403 : vector<1x1x4x256xf32> to vector<4x256xf32>
    %405 = arith.mulf %404, %373 : vector<4x256xf32>
    %406 = arith.addf %381, %405 : vector<4x256xf32>
    %c1_337 = arith.constant 1 : index
    %c9_338 = arith.constant 9 : index
    %c0_339 = arith.constant 0 : index
    %c0_340 = arith.constant 0 : index
    %407 = vector.load %arg4[%c1_337, %c9_338, %c0_339, %c0_340] : memref<2x11x4x256xf32, #tpu.memory_space<vmem>>, vector<1x1x4x256xf32>
    %408 = vector.shape_cast %407 : vector<1x1x4x256xf32> to vector<4x256xf32>
    %409 = arith.mulf %375, %408 : vector<4x256xf32>
    %410 = arith.addf %406, %409 : vector<4x256xf32>
    %cst_341 = arith.constant 5.000000e-01 : f32
    %411 = vector.broadcast %cst_341 : f32 to vector<4x256xf32>
    %412 = arith.mulf %411, %410 : vector<4x256xf32>
    %413 = math.tanh %412 : vector<4x256xf32>
    %cst_342 = arith.constant 1.000000e+00 : f32
    %414 = vector.broadcast %cst_342 : f32 to vector<4x256xf32>
    %415 = arith.addf %413, %414 : vector<4x256xf32>
    %cst_343 = arith.constant 5.000000e-01 : f32
    %416 = vector.broadcast %cst_343 : f32 to vector<4x256xf32>
    %417 = arith.mulf %416, %415 : vector<4x256xf32>
    %418 = arith.mulf %417, %375 : vector<4x256xf32>
    %c1_344 = arith.constant 1 : index
    %c5_345 = arith.constant 5 : index
    %c0_346 = arith.constant 0 : index
    %c0_347 = arith.constant 0 : index
    %419 = vector.load %arg4[%c1_344, %c5_345, %c0_346, %c0_347] : memref<2x11x4x256xf32, #tpu.memory_space<vmem>>, vector<1x1x4x256xf32>
    %420 = vector.shape_cast %419 : vector<1x1x4x256xf32> to vector<4x256xf32>
    %421 = arith.mulf %420, %373 : vector<4x256xf32>
    %422 = arith.addf %384, %421 : vector<4x256xf32>
    %423 = math.tanh %422 : vector<4x256xf32>
    %424 = arith.mulf %402, %423 : vector<4x256xf32>
    %425 = arith.addf %418, %424 : vector<4x256xf32>
    %c1_348 = arith.constant 1 : index
    %c7_349 = arith.constant 7 : index
    %c0_350 = arith.constant 0 : index
    %c0_351 = arith.constant 0 : index
    %426 = vector.load %arg4[%c1_348, %c7_349, %c0_350, %c0_351] : memref<2x11x4x256xf32, #tpu.memory_space<vmem>>, vector<1x1x4x256xf32>
    %427 = vector.shape_cast %426 : vector<1x1x4x256xf32> to vector<4x256xf32>
    %428 = arith.mulf %427, %373 : vector<4x256xf32>
    %429 = arith.addf %387, %428 : vector<4x256xf32>
    %c1_352 = arith.constant 1 : index
    %c10_353 = arith.constant 10 : index
    %c0_354 = arith.constant 0 : index
    %c0_355 = arith.constant 0 : index
    %430 = vector.load %arg4[%c1_352, %c10_353, %c0_354, %c0_355] : memref<2x11x4x256xf32, #tpu.memory_space<vmem>>, vector<1x1x4x256xf32>
    %431 = vector.shape_cast %430 : vector<1x1x4x256xf32> to vector<4x256xf32>
    %432 = arith.mulf %425, %431 : vector<4x256xf32>
    %433 = arith.addf %429, %432 : vector<4x256xf32>
    %cst_356 = arith.constant 5.000000e-01 : f32
    %434 = vector.broadcast %cst_356 : f32 to vector<4x256xf32>
    %435 = arith.mulf %434, %433 : vector<4x256xf32>
    %436 = math.tanh %435 : vector<4x256xf32>
    %cst_357 = arith.constant 1.000000e+00 : f32
    %437 = vector.broadcast %cst_357 : f32 to vector<4x256xf32>
    %438 = arith.addf %436, %437 : vector<4x256xf32>
    %cst_358 = arith.constant 5.000000e-01 : f32
    %439 = vector.broadcast %cst_358 : f32 to vector<4x256xf32>
    %440 = arith.mulf %439, %438 : vector<4x256xf32>
    %441 = math.tanh %425 : vector<4x256xf32>
    %442 = arith.mulf %440, %441 : vector<4x256xf32>
    %c1_359 = arith.constant 1 : index
    %c0_360 = arith.constant 0 : index
    %c0_361 = arith.constant 0 : index
    %443 = vector.load %arg8[%c1_359, %c0_360, %c0_361] : memref<2x4x256xf32, #tpu.memory_space<vmem>>, vector<1x4x256xf32>
    %444 = vector.shape_cast %443 : vector<1x4x256xf32> to vector<4x256xf32>
    %445 = vector.shape_cast %442 : vector<4x256xf32> to vector<1x4x256xf32>
    tpu.vector_store %arg8[%c1_359, %c0_360, %c0_361], %445 {strides = array<i32>} : memref<2x4x256xf32, #tpu.memory_space<vmem>>, vector<1x4x256xf32>,
    %c1_362 = arith.constant 1 : index
    %c0_363 = arith.constant 0 : index
    %c0_364 = arith.constant 0 : index
    %446 = vector.load %arg9[%c1_362, %c0_363, %c0_364] : memref<2x4x256xf32, #tpu.memory_space<vmem>>, vector<1x4x256xf32>
    %447 = vector.shape_cast %446 : vector<1x4x256xf32> to vector<4x256xf32>
    %448 = vector.shape_cast %425 : vector<4x256xf32> to vector<1x4x256xf32>
    tpu.vector_store %arg9[%c1_362, %c0_363, %c0_364], %448 {strides = array<i32>} : memref<2x4x256xf32, #tpu.memory_space<vmem>>, vector<1x4x256xf32>,
    %c1_i32_365 = arith.constant 1 : i32
    %c0_366 = arith.constant 0 : index
    %c0_367 = arith.constant 0 : index
    %c0_368 = arith.constant 0 : index
    %449 = vector.load %arg8[%c0_366, %c0_367, %c0_368] : memref<2x4x256xf32, #tpu.memory_space<vmem>>, vector<1x4x256xf32>
    %450 = vector.shape_cast %449 : vector<1x4x256xf32> to vector<4x256xf32>
    %c0_369 = arith.constant 0 : index
    %c0_370 = arith.constant 0 : index
    %c0_371 = arith.constant 0 : index
    %451 = vector.load %arg9[%c0_369, %c0_370, %c0_371] : memref<2x4x256xf32, #tpu.memory_space<vmem>>, vector<1x4x256xf32>
    %452 = vector.shape_cast %451 : vector<1x4x256xf32> to vector<4x256xf32>
    %c0_372 = arith.constant 0 : index
    %c1_373 = arith.constant 1 : index
    %c0_374 = arith.constant 0 : index
    %c0_375 = arith.constant 0 : index
    %453 = vector.load %arg4[%c0_372, %c1_373, %c0_374, %c0_375] : memref<2x11x4x256xf32, #tpu.memory_space<vmem>>, vector<1x1x4x256xf32>
    %454 = vector.shape_cast %453 : vector<1x1x4x256xf32> to vector<4x256xf32>
    %455 = arith.mulf %454, %450 : vector<4x256xf32>
    %456 = arith.addf %8, %455 : vector<4x256xf32>
    %c0_376 = arith.constant 0 : index
    %c8_377 = arith.constant 8 : index
    %c0_378 = arith.constant 0 : index
    %c0_379 = arith.constant 0 : index
    %457 = vector.load %arg4[%c0_376, %c8_377, %c0_378, %c0_379] : memref<2x11x4x256xf32, #tpu.memory_space<vmem>>, vector<1x1x4x256xf32>
    %458 = vector.shape_cast %457 : vector<1x1x4x256xf32> to vector<4x256xf32>
    %459 = arith.mulf %452, %458 : vector<4x256xf32>
    %460 = arith.addf %456, %459 : vector<4x256xf32>
    %cst_380 = arith.constant 5.000000e-01 : f32
    %461 = vector.broadcast %cst_380 : f32 to vector<4x256xf32>
    %462 = arith.mulf %461, %460 : vector<4x256xf32>
    %463 = math.tanh %462 : vector<4x256xf32>
    %cst_381 = arith.constant 1.000000e+00 : f32
    %464 = vector.broadcast %cst_381 : f32 to vector<4x256xf32>
    %465 = arith.addf %463, %464 : vector<4x256xf32>
    %cst_382 = arith.constant 5.000000e-01 : f32
    %466 = vector.broadcast %cst_382 : f32 to vector<4x256xf32>
    %467 = arith.mulf %466, %465 : vector<4x256xf32>
    %c0_383 = arith.constant 0 : index
    %c3_384 = arith.constant 3 : index
    %c0_385 = arith.constant 0 : index
    %c0_386 = arith.constant 0 : index
    %468 = vector.load %arg4[%c0_383, %c3_384, %c0_385, %c0_386] : memref<2x11x4x256xf32, #tpu.memory_space<vmem>>, vector<1x1x4x256xf32>
    %469 = vector.shape_cast %468 : vector<1x1x4x256xf32> to vector<4x256xf32>
    %470 = arith.mulf %469, %450 : vector<4x256xf32>
    %471 = arith.addf %11, %470 : vector<4x256xf32>
    %c0_387 = arith.constant 0 : index
    %c9_388 = arith.constant 9 : index
    %c0_389 = arith.constant 0 : index
    %c0_390 = arith.constant 0 : index
    %472 = vector.load %arg4[%c0_387, %c9_388, %c0_389, %c0_390] : memref<2x11x4x256xf32, #tpu.memory_space<vmem>>, vector<1x1x4x256xf32>
    %473 = vector.shape_cast %472 : vector<1x1x4x256xf32> to vector<4x256xf32>
    %474 = arith.mulf %452, %473 : vector<4x256xf32>
    %475 = arith.addf %471, %474 : vector<4x256xf32>
    %cst_391 = arith.constant 5.000000e-01 : f32
    %476 = vector.broadcast %cst_391 : f32 to vector<4x256xf32>
    %477 = arith.mulf %476, %475 : vector<4x256xf32>
    %478 = math.tanh %477 : vector<4x256xf32>
    %cst_392 = arith.constant 1.000000e+00 : f32
    %479 = vector.broadcast %cst_392 : f32 to vector<4x256xf32>
    %480 = arith.addf %478, %479 : vector<4x256xf32>
    %cst_393 = arith.constant 5.000000e-01 : f32
    %481 = vector.broadcast %cst_393 : f32 to vector<4x256xf32>
    %482 = arith.mulf %481, %480 : vector<4x256xf32>
    %483 = arith.mulf %482, %452 : vector<4x256xf32>
    %c0_394 = arith.constant 0 : index
    %c5_395 = arith.constant 5 : index
    %c0_396 = arith.constant 0 : index
    %c0_397 = arith.constant 0 : index
    %484 = vector.load %arg4[%c0_394, %c5_395, %c0_396, %c0_397] : memref<2x11x4x256xf32, #tpu.memory_space<vmem>>, vector<1x1x4x256xf32>
    %485 = vector.shape_cast %484 : vector<1x1x4x256xf32> to vector<4x256xf32>
    %486 = arith.mulf %485, %450 : vector<4x256xf32>
    %487 = arith.addf %14, %486 : vector<4x256xf32>
    %488 = math.tanh %487 : vector<4x256xf32>
    %489 = arith.mulf %467, %488 : vector<4x256xf32>
    %490 = arith.addf %483, %489 : vector<4x256xf32>
    %c0_398 = arith.constant 0 : index
    %c7_399 = arith.constant 7 : index
    %c0_400 = arith.constant 0 : index
    %c0_401 = arith.constant 0 : index
    %491 = vector.load %arg4[%c0_398, %c7_399, %c0_400, %c0_401] : memref<2x11x4x256xf32, #tpu.memory_space<vmem>>, vector<1x1x4x256xf32>
    %492 = vector.shape_cast %491 : vector<1x1x4x256xf32> to vector<4x256xf32>
    %493 = arith.mulf %492, %450 : vector<4x256xf32>
    %494 = arith.addf %17, %493 : vector<4x256xf32>
    %c0_402 = arith.constant 0 : index
    %c10_403 = arith.constant 10 : index
    %c0_404 = arith.constant 0 : index
    %c0_405 = arith.constant 0 : index
    %495 = vector.load %arg4[%c0_402, %c10_403, %c0_404, %c0_405] : memref<2x11x4x256xf32, #tpu.memory_space<vmem>>, vector<1x1x4x256xf32>
    %496 = vector.shape_cast %495 : vector<1x1x4x256xf32> to vector<4x256xf32>
    %497 = arith.mulf %490, %496 : vector<4x256xf32>
    %498 = arith.addf %494, %497 : vector<4x256xf32>
    %cst_406 = arith.constant 5.000000e-01 : f32
    %499 = vector.broadcast %cst_406 : f32 to vector<4x256xf32>
    %500 = arith.mulf %499, %498 : vector<4x256xf32>
    %501 = math.tanh %500 : vector<4x256xf32>
    %cst_407 = arith.constant 1.000000e+00 : f32
    %502 = vector.broadcast %cst_407 : f32 to vector<4x256xf32>
    %503 = arith.addf %501, %502 : vector<4x256xf32>
    %cst_408 = arith.constant 5.000000e-01 : f32
    %504 = vector.broadcast %cst_408 : f32 to vector<4x256xf32>
    %505 = arith.mulf %504, %503 : vector<4x256xf32>
    %506 = math.tanh %490 : vector<4x256xf32>
    %507 = arith.mulf %505, %506 : vector<4x256xf32>
    %c0_409 = arith.constant 0 : index
    %c0_410 = arith.constant 0 : index
    %c0_411 = arith.constant 0 : index
    %508 = vector.load %arg8[%c0_409, %c0_410, %c0_411] : memref<2x4x256xf32, #tpu.memory_space<vmem>>, vector<1x4x256xf32>
    %509 = vector.shape_cast %508 : vector<1x4x256xf32> to vector<4x256xf32>
    %510 = vector.shape_cast %507 : vector<4x256xf32> to vector<1x4x256xf32>
    tpu.vector_store %arg8[%c0_409, %c0_410, %c0_411], %510 {strides = array<i32>} : memref<2x4x256xf32, #tpu.memory_space<vmem>>, vector<1x4x256xf32>,
    %c0_412 = arith.constant 0 : index
    %c0_413 = arith.constant 0 : index
    %c0_414 = arith.constant 0 : index
    %511 = vector.load %arg9[%c0_412, %c0_413, %c0_414] : memref<2x4x256xf32, #tpu.memory_space<vmem>>, vector<1x4x256xf32>
    %512 = vector.shape_cast %511 : vector<1x4x256xf32> to vector<4x256xf32>
    %513 = vector.shape_cast %490 : vector<4x256xf32> to vector<1x4x256xf32>
    tpu.vector_store %arg9[%c0_412, %c0_413, %c0_414], %513 {strides = array<i32>} : memref<2x4x256xf32, #tpu.memory_space<vmem>>, vector<1x4x256xf32>,
    %c1_415 = arith.constant 1 : index
    %c0_416 = arith.constant 0 : index
    %c0_417 = arith.constant 0 : index
    %514 = vector.load %arg8[%c1_415, %c0_416, %c0_417] : memref<2x4x256xf32, #tpu.memory_space<vmem>>, vector<1x4x256xf32>
    %515 = vector.shape_cast %514 : vector<1x4x256xf32> to vector<4x256xf32>
    %c1_418 = arith.constant 1 : index
    %c0_419 = arith.constant 0 : index
    %c0_420 = arith.constant 0 : index
    %516 = vector.load %arg9[%c1_418, %c0_419, %c0_420] : memref<2x4x256xf32, #tpu.memory_space<vmem>>, vector<1x4x256xf32>
    %517 = vector.shape_cast %516 : vector<1x4x256xf32> to vector<4x256xf32>
    %c1_421 = arith.constant 1 : index
    %c0_422 = arith.constant 0 : index
    %c0_423 = arith.constant 0 : index
    %c0_424 = arith.constant 0 : index
    %518 = vector.load %arg4[%c1_421, %c0_422, %c0_423, %c0_424] : memref<2x11x4x256xf32, #tpu.memory_space<vmem>>, vector<1x1x4x256xf32>
    %519 = vector.shape_cast %518 : vector<1x1x4x256xf32> to vector<4x256xf32>
    %520 = arith.mulf %519, %507 : vector<4x256xf32>
    %c1_425 = arith.constant 1 : index
    %c2_426 = arith.constant 2 : index
    %c0_427 = arith.constant 0 : index
    %c0_428 = arith.constant 0 : index
    %521 = vector.load %arg4[%c1_425, %c2_426, %c0_427, %c0_428] : memref<2x11x4x256xf32, #tpu.memory_space<vmem>>, vector<1x1x4x256xf32>
    %522 = vector.shape_cast %521 : vector<1x1x4x256xf32> to vector<4x256xf32>
    %523 = arith.mulf %522, %507 : vector<4x256xf32>
    %c1_429 = arith.constant 1 : index
    %c4_430 = arith.constant 4 : index
    %c0_431 = arith.constant 0 : index
    %c0_432 = arith.constant 0 : index
    %524 = vector.load %arg4[%c1_429, %c4_430, %c0_431, %c0_432] : memref<2x11x4x256xf32, #tpu.memory_space<vmem>>, vector<1x1x4x256xf32>
    %525 = vector.shape_cast %524 : vector<1x1x4x256xf32> to vector<4x256xf32>
    %526 = arith.mulf %525, %507 : vector<4x256xf32>
    %c1_433 = arith.constant 1 : index
    %c6_434 = arith.constant 6 : index
    %c0_435 = arith.constant 0 : index
    %c0_436 = arith.constant 0 : index
    %527 = vector.load %arg4[%c1_433, %c6_434, %c0_435, %c0_436] : memref<2x11x4x256xf32, #tpu.memory_space<vmem>>, vector<1x1x4x256xf32>
    %528 = vector.shape_cast %527 : vector<1x1x4x256xf32> to vector<4x256xf32>
    %529 = arith.mulf %528, %507 : vector<4x256xf32>
    %c1_437 = arith.constant 1 : index
    %c1_438 = arith.constant 1 : index
    %c0_439 = arith.constant 0 : index
    %c0_440 = arith.constant 0 : index
    %530 = vector.load %arg4[%c1_437, %c1_438, %c0_439, %c0_440] : memref<2x11x4x256xf32, #tpu.memory_space<vmem>>, vector<1x1x4x256xf32>
    %531 = vector.shape_cast %530 : vector<1x1x4x256xf32> to vector<4x256xf32>
    %532 = arith.mulf %531, %515 : vector<4x256xf32>
    %533 = arith.addf %520, %532 : vector<4x256xf32>
    %c1_441 = arith.constant 1 : index
    %c8_442 = arith.constant 8 : index
    %c0_443 = arith.constant 0 : index
    %c0_444 = arith.constant 0 : index
    %534 = vector.load %arg4[%c1_441, %c8_442, %c0_443, %c0_444] : memref<2x11x4x256xf32, #tpu.memory_space<vmem>>, vector<1x1x4x256xf32>
    %535 = vector.shape_cast %534 : vector<1x1x4x256xf32> to vector<4x256xf32>
    %536 = arith.mulf %517, %535 : vector<4x256xf32>
    %537 = arith.addf %533, %536 : vector<4x256xf32>
    %cst_445 = arith.constant 5.000000e-01 : f32
    %538 = vector.broadcast %cst_445 : f32 to vector<4x256xf32>
    %539 = arith.mulf %538, %537 : vector<4x256xf32>
    %540 = math.tanh %539 : vector<4x256xf32>
    %cst_446 = arith.constant 1.000000e+00 : f32
    %541 = vector.broadcast %cst_446 : f32 to vector<4x256xf32>
    %542 = arith.addf %540, %541 : vector<4x256xf32>
    %cst_447 = arith.constant 5.000000e-01 : f32
    %543 = vector.broadcast %cst_447 : f32 to vector<4x256xf32>
    %544 = arith.mulf %543, %542 : vector<4x256xf32>
    %c1_448 = arith.constant 1 : index
    %c3_449 = arith.constant 3 : index
    %c0_450 = arith.constant 0 : index
    %c0_451 = arith.constant 0 : index
    %545 = vector.load %arg4[%c1_448, %c3_449, %c0_450, %c0_451] : memref<2x11x4x256xf32, #tpu.memory_space<vmem>>, vector<1x1x4x256xf32>
    %546 = vector.shape_cast %545 : vector<1x1x4x256xf32> to vector<4x256xf32>
    %547 = arith.mulf %546, %515 : vector<4x256xf32>
    %548 = arith.addf %523, %547 : vector<4x256xf32>
    %c1_452 = arith.constant 1 : index
    %c9_453 = arith.constant 9 : index
    %c0_454 = arith.constant 0 : index
    %c0_455 = arith.constant 0 : index
    %549 = vector.load %arg4[%c1_452, %c9_453, %c0_454, %c0_455] : memref<2x11x4x256xf32, #tpu.memory_space<vmem>>, vector<1x1x4x256xf32>
    %550 = vector.shape_cast %549 : vector<1x1x4x256xf32> to vector<4x256xf32>
    %551 = arith.mulf %517, %550 : vector<4x256xf32>
    %552 = arith.addf %548, %551 : vector<4x256xf32>
    %cst_456 = arith.constant 5.000000e-01 : f32
    %553 = vector.broadcast %cst_456 : f32 to vector<4x256xf32>
    %554 = arith.mulf %553, %552 : vector<4x256xf32>
    %555 = math.tanh %554 : vector<4x256xf32>
    %cst_457 = arith.constant 1.000000e+00 : f32
    %556 = vector.broadcast %cst_457 : f32 to vector<4x256xf32>
    %557 = arith.addf %555, %556 : vector<4x256xf32>
    %cst_458 = arith.constant 5.000000e-01 : f32
    %558 = vector.broadcast %cst_458 : f32 to vector<4x256xf32>
    %559 = arith.mulf %558, %557 : vector<4x256xf32>
    %560 = arith.mulf %559, %517 : vector<4x256xf32>
    %c1_459 = arith.constant 1 : index
    %c5_460 = arith.constant 5 : index
    %c0_461 = arith.constant 0 : index
    %c0_462 = arith.constant 0 : index
    %561 = vector.load %arg4[%c1_459, %c5_460, %c0_461, %c0_462] : memref<2x11x4x256xf32, #tpu.memory_space<vmem>>, vector<1x1x4x256xf32>
    %562 = vector.shape_cast %561 : vector<1x1x4x256xf32> to vector<4x256xf32>
    %563 = arith.mulf %562, %515 : vector<4x256xf32>
    %564 = arith.addf %526, %563 : vector<4x256xf32>
    %565 = math.tanh %564 : vector<4x256xf32>
    %566 = arith.mulf %544, %565 : vector<4x256xf32>
    %567 = arith.addf %560, %566 : vector<4x256xf32>
    %c1_463 = arith.constant 1 : index
    %c7_464 = arith.constant 7 : index
    %c0_465 = arith.constant 0 : index
    %c0_466 = arith.constant 0 : index
    %568 = vector.load %arg4[%c1_463, %c7_464, %c0_465, %c0_466] : memref<2x11x4x256xf32, #tpu.memory_space<vmem>>, vector<1x1x4x256xf32>
    %569 = vector.shape_cast %568 : vector<1x1x4x256xf32> to vector<4x256xf32>
    %570 = arith.mulf %569, %515 : vector<4x256xf32>
    %571 = arith.addf %529, %570 : vector<4x256xf32>
    %c1_467 = arith.constant 1 : index
    %c10_468 = arith.constant 10 : index
    %c0_469 = arith.constant 0 : index
    %c0_470 = arith.constant 0 : index
    %572 = vector.load %arg4[%c1_467, %c10_468, %c0_469, %c0_470] : memref<2x11x4x256xf32, #tpu.memory_space<vmem>>, vector<1x1x4x256xf32>
    %573 = vector.shape_cast %572 : vector<1x1x4x256xf32> to vector<4x256xf32>
    %574 = arith.mulf %567, %573 : vector<4x256xf32>
    %575 = arith.addf %571, %574 : vector<4x256xf32>
    %cst_471 = arith.constant 5.000000e-01 : f32
    %576 = vector.broadcast %cst_471 : f32 to vector<4x256xf32>
    %577 = arith.mulf %576, %575 : vector<4x256xf32>
    %578 = math.tanh %577 : vector<4x256xf32>
    %cst_472 = arith.constant 1.000000e+00 : f32
    %579 = vector.broadcast %cst_472 : f32 to vector<4x256xf32>
    %580 = arith.addf %578, %579 : vector<4x256xf32>
    %cst_473 = arith.constant 5.000000e-01 : f32
    %581 = vector.broadcast %cst_473 : f32 to vector<4x256xf32>
    %582 = arith.mulf %581, %580 : vector<4x256xf32>
    %583 = math.tanh %567 : vector<4x256xf32>
    %584 = arith.mulf %582, %583 : vector<4x256xf32>
    %c1_474 = arith.constant 1 : index
    %c0_475 = arith.constant 0 : index
    %c0_476 = arith.constant 0 : index
    %585 = vector.load %arg8[%c1_474, %c0_475, %c0_476] : memref<2x4x256xf32, #tpu.memory_space<vmem>>, vector<1x4x256xf32>
    %586 = vector.shape_cast %585 : vector<1x4x256xf32> to vector<4x256xf32>
    %587 = vector.shape_cast %584 : vector<4x256xf32> to vector<1x4x256xf32>
    tpu.vector_store %arg8[%c1_474, %c0_475, %c0_476], %587 {strides = array<i32>} : memref<2x4x256xf32, #tpu.memory_space<vmem>>, vector<1x4x256xf32>,
    %c1_477 = arith.constant 1 : index
    %c0_478 = arith.constant 0 : index
    %c0_479 = arith.constant 0 : index
    %588 = vector.load %arg9[%c1_477, %c0_478, %c0_479] : memref<2x4x256xf32, #tpu.memory_space<vmem>>, vector<1x4x256xf32>
    %589 = vector.shape_cast %588 : vector<1x4x256xf32> to vector<4x256xf32>
    %590 = vector.shape_cast %567 : vector<4x256xf32> to vector<1x4x256xf32>
    tpu.vector_store %arg9[%c1_477, %c0_478, %c0_479], %590 {strides = array<i32>} : memref<2x4x256xf32, #tpu.memory_space<vmem>>, vector<1x4x256xf32>,
    %c1_480 = arith.constant 1 : index
    %c0_481 = arith.constant 0 : index
    %c0_482 = arith.constant 0 : index
    %591 = vector.load %arg8[%c1_480, %c0_481, %c0_482] : memref<2x4x256xf32, #tpu.memory_space<vmem>>, vector<1x4x256xf32>
    %592 = vector.shape_cast %591 : vector<1x4x256xf32> to vector<4x256xf32>
    %c1_483 = arith.constant 1 : index
    %c0_484 = arith.constant 0 : index
    %c0_485 = arith.constant 0 : index
    %c0_486 = arith.constant 0 : index
    %593 = vector.load %arg5[%c1_483, %c0_484, %c0_485, %c0_486] : memref<2x1x4x256xf32, #tpu.memory_space<vmem>>, vector<1x1x4x256xf32>
    %594 = vector.shape_cast %593 : vector<1x1x4x256xf32> to vector<4x256xf32>
    %595 = vector.shape_cast %592 : vector<4x256xf32> to vector<1x1x4x256xf32>
    tpu.vector_store %arg5[%c1_483, %c0_484, %c0_485, %c0_486], %595 {strides = array<i32>} : memref<2x1x4x256xf32, #tpu.memory_space<vmem>>, vector<1x1x4x256xf32>,
    %c1_487 = arith.constant 1 : index
    %c0_488 = arith.constant 0 : index
    %c0_489 = arith.constant 0 : index
    %596 = vector.load %arg8[%c1_487, %c0_488, %c0_489] : memref<2x4x256xf32, #tpu.memory_space<vmem>>, vector<1x4x256xf32>
    %597 = vector.shape_cast %596 : vector<1x4x256xf32> to vector<4x256xf32>
    %c0_490 = arith.constant 0 : index
    %c0_491 = arith.constant 0 : index
    %c0_492 = arith.constant 0 : index
    %598 = vector.load %arg6[%c0_490, %c0_491, %c0_492] : memref<1x4x256xf32, #tpu.memory_space<vmem>>, vector<1x4x256xf32>
    %599 = vector.shape_cast %598 : vector<1x4x256xf32> to vector<4x256xf32>
    %600 = vector.shape_cast %597 : vector<4x256xf32> to vector<1x4x256xf32>
    tpu.vector_store %arg6[%c0_490, %c0_491, %c0_492], %600 {strides = array<i32>} : memref<1x4x256xf32, #tpu.memory_space<vmem>>, vector<1x4x256xf32>,
    %c1_493 = arith.constant 1 : index
    %c0_494 = arith.constant 0 : index
    %c0_495 = arith.constant 0 : index
    %601 = vector.load %arg9[%c1_493, %c0_494, %c0_495] : memref<2x4x256xf32, #tpu.memory_space<vmem>>, vector<1x4x256xf32>
    %602 = vector.shape_cast %601 : vector<1x4x256xf32> to vector<4x256xf32>
    %c0_496 = arith.constant 0 : index
    %c0_497 = arith.constant 0 : index
    %c0_498 = arith.constant 0 : index
    %603 = vector.load %arg7[%c0_496, %c0_497, %c0_498] : memref<1x4x256xf32, #tpu.memory_space<vmem>>, vector<1x4x256xf32>
    %604 = vector.shape_cast %603 : vector<1x4x256xf32> to vector<4x256xf32>
    %605 = vector.shape_cast %602 : vector<4x256xf32> to vector<1x4x256xf32>
    tpu.vector_store %arg7[%c0_496, %c0_497, %c0_498], %605 {strides = array<i32>} : memref<1x4x256xf32, #tpu.memory_space<vmem>>, vector<1x4x256xf32>,
    return
  }
  func.func @transform_0(%arg0: i32, %arg1: i32, %arg2: i32) -> (i32, i32, i32) {
    %c0_i32 = arith.constant 0 : i32
    return %arg2, %arg0, %arg1 : i32, i32, i32
  }
  func.func @transform_1(%arg0: i32, %arg1: i32, %arg2: i32) -> (i32, i32, i32, i32) {
    %c0_i32 = arith.constant 0 : i32
    %c0_i32_0 = arith.constant 0 : i32
    %c0_i32_1 = arith.constant 0 : i32
    return %c0_i32, %c0_i32_0, %arg0, %arg1 : i32, i32, i32, i32
  }
  func.func @transform_2(%arg0: i32, %arg1: i32, %arg2: i32) -> (i32, i32, i32, i32) {
    %c0_i32 = arith.constant 0 : i32
    %c0_i32_0 = arith.constant 0 : i32
    return %c0_i32, %arg2, %arg0, %arg1 : i32, i32, i32, i32
  }
  func.func @transform_3(%arg0: i32, %arg1: i32, %arg2: i32) -> (i32, i32, i32) {
    %c0_i32 = arith.constant 0 : i32
    return %arg2, %arg0, %arg1 : i32, i32, i32
  }
  func.func @transform_4(%arg0: i32, %arg1: i32, %arg2: i32) -> (i32, i32, i32) {
    %c0_i32 = arith.constant 0 : i32
    return %arg2, %arg0, %arg1 : i32, i32, i32
  }
}

</mosaic_0001>

<llo_original>
// kernel: tpu_custom_call.1
$region0: #{tpu_custom_call.1}
  #allocation0 [shape = 'u32[]', space=smem, size = 0x4, offset = 0x4, fixed_abs, tag = 'smem constant byte address 0x4 - core index']
  #allocation1 [shape = 'u32[144,128]{1,0:T(1,128)}', space=vmem, size = 0x12000, scoped, tag = 'internal scratch']
  #allocation2 [shape = 'f32[2,4,256]{2,1,0:T(4,128)}', space=vmem, size = 0x2000, scoped, tag = 'scratch operand']
  #allocation3 [shape = 'f32[2,4,256]{2,1,0:T(4,128)}', space=vmem, size = 0x2000, scoped, tag = 'scratch operand']
  %s0 = inlined_call_operand.hbm [shape: f32[2,4,256], index: 0, kind: input, shape index: {}]
  %s1 = inlined_call_operand.hbm [shape: f32[2,11,4,256], index: 1, kind: input, shape index: {}]
  %s2 = inlined_call_operand.hbm [shape: f32[2,2,4,256], index: 2, kind: output, shape index: {0}]
  %s3 = inlined_call_operand.hbm [shape: f32[2,4,256], index: 3, kind: output, shape index: {1}]
  %s4 = inlined_call_operand.hbm [shape: f32[2,4,256], index: 4, kind: output, shape index: {2}]
  %5 = xla_tuple %s2, %s3, %s4
  %s6 = sld [smem:[#allocation0]]
  $region65: #{tpu_custom_call.1} parent=0
    _
  %s8 = ssub.s32 1, %s6
  %s9 = scalar_select 0, %s8, %s6
  $region1: #{tpu_custom_call.1} parent=0
    #allocation4 [shape = 'u8[8192]{0}', space=vmem, size = 0x2000, scoped, tag = 'input window, operand 0']
    #allocation5 [shape = 's32[2]{0}', space=sflag, size = 0x8, scoped, tag = 'scoped memory for tpu_custom_call.1']
    #allocation6 [shape = 's32[2]{0}', space=sflag, size = 0x8, scoped, tag = 'scoped memory for tpu_custom_call.1']
    #allocation7 [shape = 'u8[90112]{0}', space=vmem, size = 0x16000, scoped, tag = 'input window, operand 1, single buffered']
    #allocation8 [shape = 's32[1]{0}', space=sflag, size = 0x4, scoped, tag = 'scoped memory for tpu_custom_call.1']
    #allocation9 [shape = 'u8[16384]{0}', space=vmem, size = 0x4000, scoped, tag = 'output window, operand 0']
    #allocation10 [shape = 'u8[8192]{0}', space=vmem, size = 0x2000, scoped, tag = 'output window, operand 1']
    #allocation11 [shape = 's32[2]{0}', space=sflag, size = 0x8, scoped, tag = 'scoped memory for tpu_custom_call.1']
    #allocation12 [shape = 'u8[8192]{0}', space=vmem, size = 0x2000, scoped, tag = 'output window, operand 2']
    %10 = vsyncpa [#allocation5], 0
    %s11 = scalar_lea.sflag [#allocation5], 1
    %12 = vsyncpa %s11, 0
    %13 = vsyncpa [#allocation8], 0
    %14 = vsyncpa [#allocation6], 0
    %s15 = scalar_lea.sflag [#allocation6], 1
    %16 = vsyncpa %s15, 0
    %17 = vsyncpa [#allocation11], 0
    %s18 = scalar_lea.sflag [#allocation11], 1
    %19 = vsyncpa %s18, 0
    loop: start=0, step=1, limit=4
    $region2: #{tpu_custom_call.1} parent=1 // loop_pre_header
      _
    $region3: #{tpu_custom_call.1} parent=1 // loop_header
      %s21 = sphi 0, %s25
      %p22 = scmp.ge.s32.totalorder %s21, 4
      %s28 = sphi 0, %s47
      %s29 = sphi 0, %s43
      %s30 = sphi 0, %s39
      %s31 = sphi 0, %s28
      %s32 = sphi 0, %s29
      %s33 = sphi 0, %s30
      %s34 = sphi 0, %s31
      %s35 = sphi 0, %s32
      %s36 = sphi 0, %s33
      %s54 = sphi 0, %s56
      %s57 = sphi 0, %s54
      %s58 = sphi 0, %s57
      %s74 = sphi 0, %s58
      %s82 = sphi 0, %s84
      %s85 = sphi 0, %s82
      %s86 = sphi 0, %s85
      %s102 = sphi 0, %s86
      %s112 = sphi 0, %s114
      %s115 = sphi 0, %s112
      %s116 = sphi 0, %s115
      %s132 = sphi 0, %s116
      %s142 = sphi 0, %s144
      %s145 = sphi 0, %s142
      %s146 = sphi 0, %s145
      %s162 = sphi 0, %s146
      %s172 = sphi 0, %s174
      %s175 = sphi 0, %s172
      %s176 = sphi 0, %s175
      %s192 = sphi 0, %s176
    $region4: #{tpu_custom_call.1} parent=1 // loop_header_branch
      %24 = sbr.rel (%p22) target = $region8
    $region5: #{tpu_custom_call.1} parent=1 // loop_body
      %s26 = ssub.s32 %s21, 1
      %s27 = ssub.s32 %s21, 2
      %s37 = sadd.s32 1, %s30
      %p38 = scmp.ge.s32.totalorder %s37, 2
      %s39 = scalar_select %p38, 0, %s37
      %s40 = sadd.s32 1, %s29
      %s41 = scalar_select %p38, %s40, %s29
      %p42 = scmp.ge.s32.totalorder %s41, 1
      %s43 = scalar_select %p42, 0, %s41
      %s44 = sadd.s32 1, %s28
      %s45 = scalar_select %p42, %s44, %s28
      %p46 = scmp.ge.s32.totalorder %s45, 1
      %s47 = scalar_select %p46, 0, %s45
      %s48 = ssub.s32 %s30, %s39
      %s49 = ssub.s32 %s28, %s47
      %s50 = sor.u32 %s48, %s49
      %s51 = ssub.s32 %s29, %s43
      %s52 = sor.u32 %s50, %s51
      %p53 = scmp.eq.s32.totalorder %s52, 0
      %s55 = sadd.s32 %s54, 1
      %s56 = scalar_select %p53, %s54, %s55
      %p59 = pneg %p53
      %p60 = scmp.eq.s32.totalorder %s21, 1
      %p61 = por %p59, %p60
      %p62 = scmp.ne.s32.totalorder %s54, %s57
      %p63 = scmp.eq.s32.totalorder %s21, 0
      %p64 = por %p62, %p63
      %p65 = scmp.ne.s32.totalorder %s54, %s57
      %p66 = scmp.eq.s32.totalorder %s26, 1
      %p67 = por %p65, %p66
      %p68 = scmp.ne.s32.totalorder %s57, %s58
      %p69 = scmp.eq.s32.totalorder %s26, 0
      %p70 = por %p68, %p69
      %p71 = scmp.ne.s32.totalorder %s57, %s58
      %p72 = scmp.eq.s32.totalorder %s27, 1
      %p73 = por %p71, %p72
      %p75 = scmp.ne.s32.totalorder %s58, %s74
      %p76 = scmp.eq.s32.totalorder %s27, 0
      %p77 = por %p75, %p76
      %s78 = ssub.s32 %s28, %s47
      %s79 = ssub.s32 %s29, %s43
      %s80 = sor.u32 %s78, %s79
      %p81 = scmp.eq.s32.totalorder %s80, 0
      %s83 = sadd.s32 %s82, 1
      %s84 = scalar_select %p81, %s82, %s83
      %p87 = pneg %p81
      %p88 = scmp.eq.s32.totalorder %s21, 1
      %p89 = por %p87, %p88
      %p90 = scmp.ne.s32.totalorder %s82, %s85
      %p91 = scmp.eq.s32.totalorder %s21, 0
      %p92 = por %p90, %p91
      %p93 = scmp.ne.s32.totalorder %s82, %s85
      %p94 = scmp.eq.s32.totalorder %s26, 1
      %p95 = por %p93, %p94
      %p96 = scmp.ne.s32.totalorder %s85, %s86
      %p97 = scmp.eq.s32.totalorder %s26, 0
      %p98 = por %p96, %p97
      %p99 = scmp.ne.s32.totalorder %s85, %s86
      %p100 = scmp.eq.s32.totalorder %s27, 1
      %p101 = por %p99, %p100
      %p103 = scmp.ne.s32.totalorder %s86, %s102
      %p104 = scmp.eq.s32.totalorder %s27, 0
      %p105 = por %p103, %p104
      %s106 = ssub.s32 %s30, %s39
      %s107 = ssub.s32 %s28, %s47
      %s108 = sor.u32 %s106, %s107
      %s109 = ssub.s32 %s29, %s43
      %s110 = sor.u32 %s108, %s109
      %p111 = scmp.eq.s32.totalorder %s110, 0
      %s113 = sadd.s32 %s112, 1
      %s114 = scalar_select %p111, %s112, %s113
      %p117 = pneg %p111
      %p118 = scmp.eq.s32.totalorder %s21, 1
      %p119 = por %p117, %p118
      %p120 = scmp.ne.s32.totalorder %s112, %s115
      %p121 = scmp.eq.s32.totalorder %s21, 0
      %p122 = por %p120, %p121
      %p123 = scmp.ne.s32.totalorder %s112, %s115
      %p124 = scmp.eq.s32.totalorder %s26, 1
      %p125 = por %p123, %p124
      %p126 = scmp.ne.s32.totalorder %s115, %s116
      %p127 = scmp.eq.s32.totalorder %s26, 0
      %p128 = por %p126, %p127
      %p129 = scmp.ne.s32.totalorder %s115, %s116
      %p130 = scmp.eq.s32.totalorder %s27, 1
      %p131 = por %p129, %p130
      %p133 = scmp.ne.s32.totalorder %s116, %s132
      %p134 = scmp.eq.s32.totalorder %s27, 0
      %p135 = por %p133, %p134
      %s136 = ssub.s32 %s30, %s39
      %s137 = ssub.s32 %s28, %s47
      %s138 = sor.u32 %s136, %s137
      %s139 = ssub.s32 %s29, %s43
      %s140 = sor.u32 %s138, %s139
      %p141 = scmp.eq.s32.totalorder %s140, 0
      %s143 = sadd.s32 %s142, 1
      %s144 = scalar_select %p141, %s142, %s143
      %p147 = pneg %p141
      %p148 = scmp.eq.s32.totalorder %s21, 1
      %p149 = por %p147, %p148
      %p150 = scmp.ne.s32.totalorder %s142, %s145
      %p151 = scmp.eq.s32.totalorder %s21, 0
      %p152 = por %p150, %p151
      %p153 = scmp.ne.s32.totalorder %s142, %s145
      %p154 = scmp.eq.s32.totalorder %s26, 1
      %p155 = por %p153, %p154
      %p156 = scmp.ne.s32.totalorder %s145, %s146
      %p157 = scmp.eq.s32.totalorder %s26, 0
      %p158 = por %p156, %p157
      %p159 = scmp.ne.s32.totalorder %s145, %s146
      %p160 = scmp.eq.s32.totalorder %s27, 1
      %p161 = por %p159, %p160
      %p163 = scmp.ne.s32.totalorder %s146, %s162
      %p164 = scmp.eq.s32.totalorder %s27, 0
      %p165 = por %p163, %p164
      %s166 = ssub.s32 %s30, %s39
      %s167 = ssub.s32 %s28, %s47
      %s168 = sor.u32 %s166, %s167
      %s169 = ssub.s32 %s29, %s43
      %s170 = sor.u32 %s168, %s169
      %p171 = scmp.eq.s32.totalorder %s170, 0
      %s173 = sadd.s32 %s172, 1
      %s174 = scalar_select %p171, %s172, %s173
      %p177 = pneg %p171
      %p178 = scmp.eq.s32.totalorder %s21, 1
      %p179 = por %p177, %p178
      %p180 = scmp.ne.s32.totalorder %s172, %s175
      %p181 = scmp.eq.s32.totalorder %s21, 0
      %p182 = por %p180, %p181
      %p183 = scmp.ne.s32.totalorder %s172, %s175
      %p184 = scmp.eq.s32.totalorder %s26, 1
      %p185 = por %p183, %p184
      %p186 = scmp.ne.s32.totalorder %s175, %s176
      %p187 = scmp.eq.s32.totalorder %s26, 0
      %p188 = por %p186, %p187
      %p189 = scmp.ne.s32.totalorder %s175, %s176
      %p190 = scmp.eq.s32.totalorder %s27, 1
      %p191 = por %p189, %p190
      %p193 = scmp.ne.s32.totalorder %s176, %s192
      %p194 = scmp.eq.s32.totalorder %s27, 0
      %p195 = por %p193, %p194
      %p196 = scmp.le.s32.totalorder 1, %s21
      %p197 = scmp.lt.s32.totalorder %s21, 3
      %p198 = pnand %p196, %p197
      %p199 = pneg %p198
      // Predicated region
      $region9: #{tpu_custom_call.1} parent=5 // pred_check
        _
      $region10: #{tpu_custom_call.1} parent=5 // pred_check_branch
        %201 = sbr.rel (%p198) target = $region12
      $region11: #{tpu_custom_call.1} parent=5 // pred_region
        %s202 = ssub.s32 %s21, 1
        // Predicated region
        $region13: #{tpu_custom_call.1} parent=11 // pred_check
          %p203 = pneg %p98
        $region14: #{tpu_custom_call.1} parent=11 // pred_check_branch
          %205 = sbr.rel (%p203) target = $region16
        $region15: #{tpu_custom_call.1} parent=11 // pred_region
          %s206 = smul.u32 2, %s32
          %s208 = ssub.s32 2816, 2816
          %209 = vsyncadd [#allocation8], %s208
          %s210 = smul.addr %s31, 2
          %s211 = sadd.s32 %s206, %s210
          %s212 = smul.addr %s211, 64
          %s213 = scalar_lea.hbm %s1, %s212
          %s214 = sshll.u32 [#allocation7], 4
          %s215 = int_to_ptr.vmem [resolvable:$true] %s214
          %220 = dma.hbm_to_vmem [thread:$0]  %s213, 2816, %s215, [#allocation8], 128, 128, 8
        $region16: #{tpu_custom_call.1} parent=11 // pred_fallthru
          _
      $region12: #{tpu_custom_call.1} parent=5 // pred_fallthru
        _
      %p221 = scmp.lt.s32.totalorder %s21, 2
      // Predicated region
      $region17: #{tpu_custom_call.1} parent=5 // pred_check
        %p222 = pneg %p221
      $region18: #{tpu_custom_call.1} parent=5 // pred_check_branch
        %224 = sbr.rel (%p222) target = $region20
      $region19: #{tpu_custom_call.1} parent=5 // pred_region
        // Predicated region
        $region21: #{tpu_custom_call.1} parent=19 // pred_check
          %p225 = pneg %p64
        $region22: #{tpu_custom_call.1} parent=19 // pred_check_branch
          %227 = sbr.rel (%p225) target = $region24
        $region23: #{tpu_custom_call.1} parent=19 // pred_region
          %s228 = sand.u32 %s54, 1
          %s229 = scalar_lea.sflag [#allocation5], %s228
          %s230 = sand.u32 %s54, 1
          %s231 = smul.addr %s230, 8
          %s232 = scalar_lea.vmem [#allocation4], %s231
          %s233 = smul.u32 2, %s29
          %s235 = ssub.s32 128, 128
          %236 = vsyncadd %s229, %s235
          %s237 = smul.addr %s28, 2
          %s238 = sadd.s32 %s233, %s237
          %s239 = smul.addr %s30, 2
          %s240 = sadd.s32 %s238, %s239
          %s241 = smul.addr %s240, 64
          %s242 = scalar_lea.hbm %s0, %s241
          %s244 = sshll.u32 %s232, 4
          %s245 = int_to_ptr.vmem [resolvable:$true] %s244
          %247 = dma.hbm_to_vmem [thread:$0]  %s242, 128, %s245, %s229
        $region24: #{tpu_custom_call.1} parent=19 // pred_fallthru
          _
      $region20: #{tpu_custom_call.1} parent=5 // pred_fallthru
        _
      %p248 = scmp.le.s32.totalorder 1, %s21
      %p249 = scmp.lt.s32.totalorder %s21, 3
      %p250 = pnand %p248, %p249
      %p251 = pneg %p250
      // Predicated region
      $region25: #{tpu_custom_call.1} parent=5 // pred_check
        _
      $region26: #{tpu_custom_call.1} parent=5 // pred_check_branch
        %253 = sbr.rel (%p250) target = $region28
      $region27: #{tpu_custom_call.1} parent=5 // pred_region
        %s254 = ssub.s32 %s21, 1
        %s255 = sand.u32 %s57, 1
        %s256 = scalar_lea.sflag [#allocation5], %s255
        %s257 = sand.u32 %s57, 1
        %s258 = smul.addr %s257, 8
        %s259 = scalar_lea.vmem [#allocation4], %s258
        // Predicated region
        $region29: #{tpu_custom_call.1} parent=27 // pred_check
          %p260 = pneg %p70
        $region30: #{tpu_custom_call.1} parent=27 // pred_check_branch
          %262 = sbr.rel (%p260) target = $region32
        $region31: #{tpu_custom_call.1} parent=27 // pred_region
          %263 = dma.done %s256, 128
        $region32: #{tpu_custom_call.1} parent=27 // pred_fallthru
          _
        // Predicated region
        $region33: #{tpu_custom_call.1} parent=27 // pred_check
          %p264 = pneg %p98
        $region34: #{tpu_custom_call.1} parent=27 // pred_check_branch
          %266 = sbr.rel (%p264) target = $region36
        $region35: #{tpu_custom_call.1} parent=27 // pred_region
          %267 = dma.done [#allocation8], 2816
        $region36: #{tpu_custom_call.1} parent=27 // pred_fallthru
          _
        %s268 = sand.u32 %s57, 1
        %s269 = scalar_lea.sflag [#allocation5], %s268
        %s270 = sand.u32 %s57, 1
        %s271 = smul.addr %s270, 8
        %s272 = scalar_lea.vmem [#allocation4], %s271
        %p273 = pneg %p70
        %p274 = pneg %p67
        %p275 = pneg %p98
        %p276 = pneg %p95
        %p277 = pneg %p128
        %p278 = pneg %p125
        %s279 = sand.u32 %s115, 1
        %s280 = scalar_lea.sflag [#allocation6], %s279
        %s281 = sand.u32 %s115, 1
        %s282 = smul.addr %s281, 16
        %s283 = scalar_lea.vmem [#allocation9], %s282
        %p284 = pneg %p158
        %p285 = pneg %p155
        %s286 = sand.u32 %s26, 1
        %s287 = scalar_lea.sflag [#allocation11], %s286
        %s288 = sand.u32 %s145, 1
        %s289 = smul.addr %s288, 8
        %s290 = scalar_lea.vmem [#allocation10], %s289
        %p291 = pneg %p188
        %p292 = pneg %p185
        %s293 = sand.u32 %s26, 1
        %s294 = scalar_lea.sflag [#allocation11], %s293
        %s295 = sand.u32 %s175, 1
        %s296 = smul.addr %s295, 8
        %s297 = scalar_lea.vmem [#allocation12], %s296
        %s298 = smul.u32 2, %s32
        %s299 = smul.u32 2, %s32
        %s300 = smul.u32 2, %s32
        %s301 = smul.u32 2, %s32
        %s302 = smul.u32 2, %s32
        %303 = vst [vmem:[#allocation2] sm:$0xff] 0.0
        %304 = vst [vmem:[#allocation2 + $0x8] sm:$0xff] 0.0
        %305 = vst [vmem:[#allocation3] sm:$0xff] 0.0
        %306 = vst [vmem:[#allocation3 + $0x8] sm:$0xff] 0.0
        %v307 = vld [vmem:[%s259] sm:$0xff]
        %v308 = vld [vmem:[#allocation7] sm:$0xff]
        %v309 = vmul.f32 %v308, %v307
        %s310 = scalar_lea.vmem [#allocation7], 16
        %v311 = vld [vmem:[%s310] sm:$0xff]
        %v312 = vmul.f32 %v311, %v307
        %s313 = scalar_lea.vmem [#allocation7], 32
        %v314 = vld [vmem:[%s313] sm:$0xff]
        %v315 = vmul.f32 %v314, %v307
        %s316 = scalar_lea.vmem [#allocation7], 48
        %v317 = vld [vmem:[%s316] sm:$0xff]
        %v318 = vmul.f32 %v317, %v307
        %v319 = vld [vmem:[#allocation2] sm:$0xff]
        %v320 = vld [vmem:[#allocation3] sm:$0xff]
        %s321 = scalar_lea.vmem [#allocation7], 8
        %v322 = vld [vmem:[%s321] sm:$0xff]
        %v323 = vmul.f32 %v322, %v319
        %v324 = vadd.f32 %v309, %v323
        %s325 = scalar_lea.vmem [#allocation7], 64
        %v326 = vld [vmem:[%s325] sm:$0xff]
        %v327 = vmul.f32 %v320, %v326
        %v328 = vadd.f32 %v324, %v327
        %v329 = vmul.f32 %v328, 0.5
        %v330 = vtanh.pop %v329
        %v331 = vadd.f32 %v330, 1.0
        %v332 = vmul.f32 %v331, 0.5
        %s333 = scalar_lea.vmem [#allocation7], 24
        %v334 = vld [vmem:[%s333] sm:$0xff]
        %v335 = vmul.f32 %v334, %v319
        %v336 = vadd.f32 %v312, %v335
        %s337 = scalar_lea.vmem [#allocation7], 72
        %v338 = vld [vmem:[%s337] sm:$0xff]
        %v339 = vmul.f32 %v320, %v338
        %v340 = vadd.f32 %v336, %v339
        %v341 = vmul.f32 %v340, 0.5
        %v342 = vtanh.pop %v341
        %v343 = vadd.f32 %v342, 1.0
        %v344 = vmul.f32 %v343, 0.5
        %v345 = vmul.f32 %v344, %v320
        %s346 = scalar_lea.vmem [#allocation7], 40
        %v347 = vld [vmem:[%s346] sm:$0xff]
        %v348 = vmul.f32 %v347, %v319
        %v349 = vadd.f32 %v315, %v348
        %v350 = vtanh.pop %v349
        %v351 = vmul.f32 %v332, %v350
        %v352 = vadd.f32 %v345, %v351
        %s353 = scalar_lea.vmem [#allocation7], 56
        %v354 = vld [vmem:[%s353] sm:$0xff]
        %v355 = vmul.f32 %v354, %v319
        %v356 = vadd.f32 %v318, %v355
        %s357 = scalar_lea.vmem [#allocation7], 80
        %v358 = vld [vmem:[%s357] sm:$0xff]
        %v359 = vmul.f32 %v352, %v358
        %v360 = vadd.f32 %v356, %v359
        %v361 = vmul.f32 %v360, 0.5
        %v362 = vtanh.pop %v361
        %v363 = vadd.f32 %v362, 1.0
        %v364 = vmul.f32 %v363, 0.5
        %v365 = vtanh.pop %v352
        %v366 = vmul.f32 %v364, %v365
        %367 = vst [vmem:[#allocation2] sm:$0xff] %v366
        %368 = vst [vmem:[#allocation3] sm:$0xff] %v352
        %s369 = scalar_lea.vmem [#allocation2], 8
        %v370 = vld [vmem:[%s369] sm:$0xff]
        %s371 = scalar_lea.vmem [#allocation3], 8
        %v372 = vld [vmem:[%s371] sm:$0xff]
        %s373 = scalar_lea.vmem [#allocation7], 88
        %v374 = vld [vmem:[%s373] sm:$0xff]
        %v375 = vmul.f32 %v374, %v366
        %s376 = scalar_lea.vmem [#allocation7], 104
        %v377 = vld [vmem:[%s376] sm:$0xff]
        %v378 = vmul.f32 %v377, %v366
        %s379 = scalar_lea.vmem [#allocation7], 120
        %v380 = vld [vmem:[%s379] sm:$0xff]
        %v381 = vmul.f32 %v380, %v366
        %s382 = scalar_lea.vmem [#allocation7], 136
        %v383 = vld [vmem:[%s382] sm:$0xff]
        %v384 = vmul.f32 %v383, %v366
        %s385 = scalar_lea.vmem [#allocation7], 96
        %v386 = vld [vmem:[%s385] sm:$0xff]
        %v387 = vmul.f32 %v386, %v370
        %v388 = vadd.f32 %v375, %v387
        %s389 = scalar_lea.vmem [#allocation7], 152
        %v390 = vld [vmem:[%s389] sm:$0xff]
        %v391 = vmul.f32 %v372, %v390
        %v392 = vadd.f32 %v388, %v391
        %v393 = vmul.f32 %v392, 0.5
        %v394 = vtanh.pop %v393
        %v395 = vadd.f32 %v394, 1.0
        %v396 = vmul.f32 %v395, 0.5
        %s397 = scalar_lea.vmem [#allocation7], 112
        %v398 = vld [vmem:[%s397] sm:$0xff]
        %v399 = vmul.f32 %v398, %v370
        %v400 = vadd.f32 %v378, %v399
        %s401 = scalar_lea.vmem [#allocation7], 160
        %v402 = vld [vmem:[%s401] sm:$0xff]
        %v403 = vmul.f32 %v372, %v402
        %v404 = vadd.f32 %v400, %v403
        %v405 = vmul.f32 %v404, 0.5
        %v406 = vtanh.pop %v405
        %v407 = vadd.f32 %v406, 1.0
        %v408 = vmul.f32 %v407, 0.5
        %v409 = vmul.f32 %v408, %v372
        %s410 = scalar_lea.vmem [#allocation7], 128
        %v411 = vld [vmem:[%s410] sm:$0xff]
        %v412 = vmul.f32 %v411, %v370
        %v413 = vadd.f32 %v381, %v412
        %v414 = vtanh.pop %v413
        %v415 = vmul.f32 %v396, %v414
        %v416 = vadd.f32 %v409, %v415
        %s417 = scalar_lea.vmem [#allocation7], 144
        %v418 = vld [vmem:[%s417] sm:$0xff]
        %v419 = vmul.f32 %v418, %v370
        %v420 = vadd.f32 %v384, %v419
        %s421 = scalar_lea.vmem [#allocation7], 168
        %v422 = vld [vmem:[%s421] sm:$0xff]
        %v423 = vmul.f32 %v416, %v422
        %v424 = vadd.f32 %v420, %v423
        %v425 = vmul.f32 %v424, 0.5
        %v426 = vtanh.pop %v425
        %v427 = vadd.f32 %v426, 1.0
        %v428 = vmul.f32 %v427, 0.5
        %v429 = vtanh.pop %v416
        %v430 = vmul.f32 %v428, %v429
        %431 = vst [vmem:[%s369] sm:$0xff] %v430
        %432 = vst [vmem:[%s371] sm:$0xff] %v416
        %v433 = vld [vmem:[#allocation2] sm:$0xff]
        %v434 = vld [vmem:[#allocation3] sm:$0xff]
        %v435 = vld [vmem:[%s321] sm:$0xff]
        %v436 = vmul.f32 %v435, %v433
        %v437 = vadd.f32 %v309, %v436
        %v438 = vld [vmem:[%s325] sm:$0xff]
        %v439 = vmul.f32 %v434, %v438
        %v440 = vadd.f32 %v437, %v439
        %v441 = vmul.f32 %v440, 0.5
        %v442 = vtanh.pop %v441
        %v443 = vadd.f32 %v442, 1.0
        %v444 = vmul.f32 %v443, 0.5
        %v445 = vld [vmem:[%s333] sm:$0xff]
        %v446 = vmul.f32 %v445, %v433
        %v447 = vadd.f32 %v312, %v446
        %v448 = vld [vmem:[%s337] sm:$0xff]
        %v449 = vmul.f32 %v434, %v448
        %v450 = vadd.f32 %v447, %v449
        %v451 = vmul.f32 %v450, 0.5
        %v452 = vtanh.pop %v451
        %v453 = vadd.f32 %v452, 1.0
        %v454 = vmul.f32 %v453, 0.5
        %v455 = vmul.f32 %v454, %v434
        %v456 = vld [vmem:[%s346] sm:$0xff]
        %v457 = vmul.f32 %v456, %v433
        %v458 = vadd.f32 %v315, %v457
        %v459 = vtanh.pop %v458
        %v460 = vmul.f32 %v444, %v459
        %v461 = vadd.f32 %v455, %v460
        %v462 = vld [vmem:[%s353] sm:$0xff]
        %v463 = vmul.f32 %v462, %v433
        %v464 = vadd.f32 %v318, %v463
        %v465 = vld [vmem:[%s357] sm:$0xff]
        %v466 = vmul.f32 %v461, %v465
        %v467 = vadd.f32 %v464, %v466
        %v468 = vmul.f32 %v467, 0.5
        %v469 = vtanh.pop %v468
        %v470 = vadd.f32 %v469, 1.0
        %v471 = vmul.f32 %v470, 0.5
        %v472 = vtanh.pop %v461
        %v473 = vmul.f32 %v471, %v472
        %474 = vst [vmem:[#allocation2] sm:$0xff] %v473
        %475 = vst [vmem:[#allocation3] sm:$0xff] %v461
        %v476 = vld [vmem:[%s369] sm:$0xff]
        %v477 = vld [vmem:[%s371] sm:$0xff]
        %v478 = vld [vmem:[%s373] sm:$0xff]
        %v479 = vmul.f32 %v478, %v473
        %v480 = vld [vmem:[%s376] sm:$0xff]
        %v481 = vmul.f32 %v480, %v473
        %v482 = vld [vmem:[%s379] sm:$0xff]
        %v483 = vmul.f32 %v482, %v473
        %v484 = vld [vmem:[%s382] sm:$0xff]
        %v485 = vmul.f32 %v484, %v473
        %v486 = vld [vmem:[%s385] sm:$0xff]
        %v487 = vmul.f32 %v486, %v476
        %v488 = vadd.f32 %v479, %v487
        %v489 = vld [vmem:[%s389] sm:$0xff]
        %v490 = vmul.f32 %v477, %v489
        %v491 = vadd.f32 %v488, %v490
        %v492 = vmul.f32 %v491, 0.5
        %v493 = vtanh.pop %v492
        %v494 = vadd.f32 %v493, 1.0
        %v495 = vmul.f32 %v494, 0.5
        %v496 = vld [vmem:[%s397] sm:$0xff]
        %v497 = vmul.f32 %v496, %v476
        %v498 = vadd.f32 %v481, %v497
        %v499 = vld [vmem:[%s401] sm:$0xff]
        %v500 = vmul.f32 %v477, %v499
        %v501 = vadd.f32 %v498, %v500
        %v502 = vmul.f32 %v501, 0.5
        %v503 = vtanh.pop %v502
        %v504 = vadd.f32 %v503, 1.0
        %v505 = vmul.f32 %v504, 0.5
        %v506 = vmul.f32 %v505, %v477
        %v507 = vld [vmem:[%s410] sm:$0xff]
        %v508 = vmul.f32 %v507, %v476
        %v509 = vadd.f32 %v483, %v508
        %v510 = vtanh.pop %v509
        %v511 = vmul.f32 %v495, %v510
        %v512 = vadd.f32 %v506, %v511
        %v513 = vld [vmem:[%s417] sm:$0xff]
        %v514 = vmul.f32 %v513, %v476
        %v515 = vadd.f32 %v485, %v514
        %v516 = vld [vmem:[%s421] sm:$0xff]
        %v517 = vmul.f32 %v512, %v516
        %v518 = vadd.f32 %v515, %v517
        %v519 = vmul.f32 %v518, 0.5
        %v520 = vtanh.pop %v519
        %v521 = vadd.f32 %v520, 1.0
        %v522 = vmul.f32 %v521, 0.5
        %v523 = vtanh.pop %v512
        %v524 = vmul.f32 %v522, %v523
        %525 = vst [vmem:[%s369] sm:$0xff] %v524
        %526 = vst [vmem:[%s371] sm:$0xff] %v512
        %v527 = vld [vmem:[%s369] sm:$0xff]
        %528 = vst [vmem:[%s283] sm:$0xff] %v527
        %v529 = vld [vmem:[#allocation2] sm:$0xff]
        %v530 = vld [vmem:[#allocation3] sm:$0xff]
        %v531 = vld [vmem:[%s321] sm:$0xff]
        %v532 = vmul.f32 %v531, %v529
        %v533 = vadd.f32 %v309, %v532
        %v534 = vld [vmem:[%s325] sm:$0xff]
        %v535 = vmul.f32 %v530, %v534
        %v536 = vadd.f32 %v533, %v535
        %v537 = vmul.f32 %v536, 0.5
        %v538 = vtanh.pop %v537
        %v539 = vadd.f32 %v538, 1.0
        %v540 = vmul.f32 %v539, 0.5
        %v541 = vld [vmem:[%s333] sm:$0xff]
        %v542 = vmul.f32 %v541, %v529
        %v543 = vadd.f32 %v312, %v542
        %v544 = vld [vmem:[%s337] sm:$0xff]
        %v545 = vmul.f32 %v530, %v544
        %v546 = vadd.f32 %v543, %v545
        %v547 = vmul.f32 %v546, 0.5
        %v548 = vtanh.pop %v547
        %v549 = vadd.f32 %v548, 1.0
        %v550 = vmul.f32 %v549, 0.5
        %v551 = vmul.f32 %v550, %v530
        %v552 = vld [vmem:[%s346] sm:$0xff]
        %v553 = vmul.f32 %v552, %v529
        %v554 = vadd.f32 %v315, %v553
        %v555 = vtanh.pop %v554
        %v556 = vmul.f32 %v540, %v555
        %v557 = vadd.f32 %v551, %v556
        %v558 = vld [vmem:[%s353] sm:$0xff]
        %v559 = vmul.f32 %v558, %v529
        %v560 = vadd.f32 %v318, %v559
        %v561 = vld [vmem:[%s357] sm:$0xff]
        %v562 = vmul.f32 %v557, %v561
        %v563 = vadd.f32 %v560, %v562
        %v564 = vmul.f32 %v563, 0.5
        %v565 = vtanh.pop %v564
        %v566 = vadd.f32 %v565, 1.0
        %v567 = vmul.f32 %v566, 0.5
        %v568 = vtanh.pop %v557
        %v569 = vmul.f32 %v567, %v568
        %570 = vst [vmem:[#allocation2] sm:$0xff] %v569
        %571 = vst [vmem:[#allocation3] sm:$0xff] %v557
        %v572 = vld [vmem:[%s369] sm:$0xff]
        %v573 = vld [vmem:[%s371] sm:$0xff]
        %v574 = vld [vmem:[%s373] sm:$0xff]
        %v575 = vmul.f32 %v574, %v569
        %v576 = vld [vmem:[%s376] sm:$0xff]
        %v577 = vmul.f32 %v576, %v569
        %v578 = vld [vmem:[%s379] sm:$0xff]
        %v579 = vmul.f32 %v578, %v569
        %v580 = vld [vmem:[%s382] sm:$0xff]
        %v581 = vmul.f32 %v580, %v569
        %v582 = vld [vmem:[%s385] sm:$0xff]
        %v583 = vmul.f32 %v582, %v572
        %v584 = vadd.f32 %v575, %v583
        %v585 = vld [vmem:[%s389] sm:$0xff]
        %v586 = vmul.f32 %v573, %v585
        %v587 = vadd.f32 %v584, %v586
        %v588 = vmul.f32 %v587, 0.5
        %v589 = vtanh.pop %v588
        %v590 = vadd.f32 %v589, 1.0
        %v591 = vmul.f32 %v590, 0.5
        %v592 = vld [vmem:[%s397] sm:$0xff]
        %v593 = vmul.f32 %v592, %v572
        %v594 = vadd.f32 %v577, %v593
        %v595 = vld [vmem:[%s401] sm:$0xff]
        %v596 = vmul.f32 %v573, %v595
        %v597 = vadd.f32 %v594, %v596
        %v598 = vmul.f32 %v597, 0.5
        %v599 = vtanh.pop %v598
        %v600 = vadd.f32 %v599, 1.0
        %v601 = vmul.f32 %v600, 0.5
        %v602 = vmul.f32 %v601, %v573
        %v603 = vld [vmem:[%s410] sm:$0xff]
        %v604 = vmul.f32 %v603, %v572
        %v605 = vadd.f32 %v579, %v604
        %v606 = vtanh.pop %v605
        %v607 = vmul.f32 %v591, %v606
        %v608 = vadd.f32 %v602, %v607
        %v609 = vld [vmem:[%s417] sm:$0xff]
        %v610 = vmul.f32 %v609, %v572
        %v611 = vadd.f32 %v581, %v610
        %v612 = vld [vmem:[%s421] sm:$0xff]
        %v613 = vmul.f32 %v608, %v612
        %v614 = vadd.f32 %v611, %v613
        %v615 = vmul.f32 %v614, 0.5
        %v616 = vtanh.pop %v615
        %v617 = vadd.f32 %v616, 1.0
        %v618 = vmul.f32 %v617, 0.5
        %v619 = vtanh.pop %v608
        %v620 = vmul.f32 %v618, %v619
        %621 = vst [vmem:[%s369] sm:$0xff] %v620
        %622 = vst [vmem:[%s371] sm:$0xff] %v608
        %v623 = vld [vmem:[#allocation2] sm:$0xff]
        %v624 = vld [vmem:[#allocation3] sm:$0xff]
        %v625 = vld [vmem:[%s321] sm:$0xff]
        %v626 = vmul.f32 %v625, %v623
        %v627 = vadd.f32 %v309, %v626
        %v628 = vld [vmem:[%s325] sm:$0xff]
        %v629 = vmul.f32 %v624, %v628
        %v630 = vadd.f32 %v627, %v629
        %v631 = vmul.f32 %v630, 0.5
        %v632 = vtanh.pop %v631
        %v633 = vadd.f32 %v632, 1.0
        %v634 = vmul.f32 %v633, 0.5
        %v635 = vld [vmem:[%s333] sm:$0xff]
        %v636 = vmul.f32 %v635, %v623
        %v637 = vadd.f32 %v312, %v636
        %v638 = vld [vmem:[%s337] sm:$0xff]
        %v639 = vmul.f32 %v624, %v638
        %v640 = vadd.f32 %v637, %v639
        %v641 = vmul.f32 %v640, 0.5
        %v642 = vtanh.pop %v641
        %v643 = vadd.f32 %v642, 1.0
        %v644 = vmul.f32 %v643, 0.5
        %v645 = vmul.f32 %v644, %v624
        %v646 = vld [vmem:[%s346] sm:$0xff]
        %v647 = vmul.f32 %v646, %v623
        %v648 = vadd.f32 %v315, %v647
        %v649 = vtanh.pop %v648
        %v650 = vmul.f32 %v634, %v649
        %v651 = vadd.f32 %v645, %v650
        %v652 = vld [vmem:[%s353] sm:$0xff]
        %v653 = vmul.f32 %v652, %v623
        %v654 = vadd.f32 %v318, %v653
        %v655 = vld [vmem:[%s357] sm:$0xff]
        %v656 = vmul.f32 %v651, %v655
        %v657 = vadd.f32 %v654, %v656
        %v658 = vmul.f32 %v657, 0.5
        %v659 = vtanh.pop %v658
        %v660 = vadd.f32 %v659, 1.0
        %v661 = vmul.f32 %v660, 0.5
        %v662 = vtanh.pop %v651
        %v663 = vmul.f32 %v661, %v662
        %664 = vst [vmem:[#allocation2] sm:$0xff] %v663
        %665 = vst [vmem:[#allocation3] sm:$0xff] %v651
        %v666 = vld [vmem:[%s369] sm:$0xff]
        %v667 = vld [vmem:[%s371] sm:$0xff]
        %v668 = vld [vmem:[%s373] sm:$0xff]
        %v669 = vmul.f32 %v668, %v663
        %v670 = vld [vmem:[%s376] sm:$0xff]
        %v671 = vmul.f32 %v670, %v663
        %v672 = vld [vmem:[%s379] sm:$0xff]
        %v673 = vmul.f32 %v672, %v663
        %v674 = vld [vmem:[%s382] sm:$0xff]
        %v675 = vmul.f32 %v674, %v663
        %v676 = vld [vmem:[%s385] sm:$0xff]
        %v677 = vmul.f32 %v676, %v666
        %v678 = vadd.f32 %v669, %v677
        %v679 = vld [vmem:[%s389] sm:$0xff]
        %v680 = vmul.f32 %v667, %v679
        %v681 = vadd.f32 %v678, %v680
        %v682 = vmul.f32 %v681, 0.5
        %v683 = vtanh.pop %v682
        %v684 = vadd.f32 %v683, 1.0
        %v685 = vmul.f32 %v684, 0.5
        %v686 = vld [vmem:[%s397] sm:$0xff]
        %v687 = vmul.f32 %v686, %v666
        %v688 = vadd.f32 %v671, %v687
        %v689 = vld [vmem:[%s401] sm:$0xff]
        %v690 = vmul.f32 %v667, %v689
        %v691 = vadd.f32 %v688, %v690
        %v692 = vmul.f32 %v691, 0.5
        %v693 = vtanh.pop %v692
        %v694 = vadd.f32 %v693, 1.0
        %v695 = vmul.f32 %v694, 0.5
        %v696 = vmul.f32 %v695, %v667
        %v697 = vld [vmem:[%s410] sm:$0xff]
        %v698 = vmul.f32 %v697, %v666
        %v699 = vadd.f32 %v673, %v698
        %v700 = vtanh.pop %v699
        %v701 = vmul.f32 %v685, %v700
        %v702 = vadd.f32 %v696, %v701
        %v703 = vld [vmem:[%s417] sm:$0xff]
        %v704 = vmul.f32 %v703, %v666
        %v705 = vadd.f32 %v675, %v704
        %v706 = vld [vmem:[%s421] sm:$0xff]
        %v707 = vmul.f32 %v702, %v706
        %v708 = vadd.f32 %v705, %v707
        %v709 = vmul.f32 %v708, 0.5
        %v710 = vtanh.pop %v709
        %v711 = vadd.f32 %v710, 1.0
        %v712 = vmul.f32 %v711, 0.5
        %v713 = vtanh.pop %v702
        %v714 = vmul.f32 %v712, %v713
        %715 = vst [vmem:[%s369] sm:$0xff] %v714
        %716 = vst [vmem:[%s371] sm:$0xff] %v702
        %v717 = vld [vmem:[%s369] sm:$0xff]
        %s718 = scalar_lea.vmem %s283, 8 [#allocation9]
        %719 = vst [vmem:[%s718] sm:$0xff] %v717
        %v720 = vld [vmem:[%s369] sm:$0xff]
        %721 = vst [vmem:[%s290] sm:$0xff] %v720
        %v722 = vld [vmem:[%s371] sm:$0xff]
        %723 = vst [vmem:[%s297] sm:$0xff] %v722
        %s724 = sand.u32 %s115, 1
        %s725 = scalar_lea.sflag [#allocation6], %s724
        %s726 = sand.u32 %s115, 1
        %s727 = smul.addr %s726, 16
        %s728 = scalar_lea.vmem [#allocation9], %s727
        %s729 = sand.u32 %s26, 1
        %s730 = scalar_lea.sflag [#allocation11], %s729
        %s731 = sand.u32 %s145, 1
        %s732 = smul.addr %s731, 8
        %s733 = scalar_lea.vmem [#allocation10], %s732
        %s734 = sand.u32 %s26, 1
        %s735 = scalar_lea.sflag [#allocation11], %s734
        %s736 = sand.u32 %s175, 1
        %s737 = smul.addr %s736, 8
        %s738 = scalar_lea.vmem [#allocation12], %s737
        // Predicated region
        $region37: #{tpu_custom_call.1} parent=27 // pred_check
          %p739 = pneg %p125
        $region38: #{tpu_custom_call.1} parent=27 // pred_check_branch
          %741 = sbr.rel (%p739) target = $region40
        $region39: #{tpu_custom_call.1} parent=27 // pred_region
          %s742 = smul.u32 2, %s32
          %s744 = ssub.s32 256, 256
          %745 = vsyncadd %s725, %s744
          %s746 = smul.addr %s31, 2
          %s747 = sadd.s32 %s742, %s746
          %s748 = smul.addr %s33, 2
          %s749 = sadd.s32 %s747, %s748
          %s750 = smul.addr %s749, 64
          %s751 = scalar_lea.hbm %s2, %s750
          %s752 = sshll.u32 %s728, 4
          %s753 = int_to_ptr.vmem [resolvable:$true] %s752
          %758 = dma.vmem_to_hbm [thread:$0]  %s753, 256, %s751, %s725, 128, 256, 8
        $region40: #{tpu_custom_call.1} parent=27 // pred_fallthru
          _
        // Predicated region
        $region41: #{tpu_custom_call.1} parent=27 // pred_check
          %p759 = pneg %p155
        $region42: #{tpu_custom_call.1} parent=27 // pred_check_branch
          %761 = sbr.rel (%p759) target = $region44
        $region43: #{tpu_custom_call.1} parent=27 // pred_region
          %s762 = smul.u32 2, %s32
          %s764 = ssub.s32 128, 128
          %765 = vsyncadd %s730, %s764
          %s766 = smul.addr %s31, 2
          %s767 = sadd.s32 %s762, %s766
          %s768 = smul.addr %s33, 2
          %s769 = sadd.s32 %s767, %s768
          %s770 = smul.addr %s769, 64
          %s771 = scalar_lea.hbm %s3, %s770
          %s773 = sshll.u32 %s733, 4
          %s774 = int_to_ptr.vmem [resolvable:$true] %s773
          %776 = dma.vmem_to_hbm [thread:$0]  %s774, 128, %s771, %s730
        $region44: #{tpu_custom_call.1} parent=27 // pred_fallthru
          _
        // Predicated region
        $region45: #{tpu_custom_call.1} parent=27 // pred_check
          %p777 = pneg %p185
        $region46: #{tpu_custom_call.1} parent=27 // pred_check_branch
          %779 = sbr.rel (%p777) target = $region48
        $region47: #{tpu_custom_call.1} parent=27 // pred_region
          %s780 = smul.u32 2, %s32
          %s782 = ssub.s32 128, 128
          %783 = vsyncadd %s735, %s782
          %s784 = smul.addr %s31, 2
          %s785 = sadd.s32 %s780, %s784
          %s786 = smul.addr %s33, 2
          %s787 = sadd.s32 %s785, %s786
          %s788 = smul.addr %s787, 64
          %s789 = scalar_lea.hbm %s4, %s788
          %s791 = sshll.u32 %s738, 4
          %s792 = int_to_ptr.vmem [resolvable:$true] %s791
          %794 = dma.vmem_to_hbm [thread:$0]  %s792, 128, %s789, %s735
        $region48: #{tpu_custom_call.1} parent=27 // pred_fallthru
          _
      $region28: #{tpu_custom_call.1} parent=5 // pred_fallthru
        _
      %p795 = scmp.le.s32.totalorder 2, %s21
      // Predicated region
      $region49: #{tpu_custom_call.1} parent=5 // pred_check
        %p796 = pneg %p795
      $region50: #{tpu_custom_call.1} parent=5 // pred_check_branch
        %798 = sbr.rel (%p796) target = $region52
      $region51: #{tpu_custom_call.1} parent=5 // pred_region
        %s799 = ssub.s32 %s21, 2
        // Predicated region
        $region53: #{tpu_custom_call.1} parent=51 // pred_check
          %p800 = pneg %p131
        $region54: #{tpu_custom_call.1} parent=51 // pred_check_branch
          %802 = sbr.rel (%p800) target = $region56
        $region55: #{tpu_custom_call.1} parent=51 // pred_region
          %s803 = sand.u32 %s116, 1
          %s804 = scalar_lea.sflag [#allocation6], %s803
          %s805 = sand.u32 %s116, 1
          %s806 = smul.addr %s805, 16
          %s807 = scalar_lea.vmem [#allocation9], %s806
          %808 = dma.done %s804, 256
        $region56: #{tpu_custom_call.1} parent=51 // pred_fallthru
          _
        // Predicated region
        $region57: #{tpu_custom_call.1} parent=51 // pred_check
          %p809 = pneg %p161
        $region58: #{tpu_custom_call.1} parent=51 // pred_check_branch
          %811 = sbr.rel (%p809) target = $region60
        $region59: #{tpu_custom_call.1} parent=51 // pred_region
          %s812 = sand.u32 %s27, 1
          %s813 = scalar_lea.sflag [#allocation11], %s812
          %s814 = sand.u32 %s146, 1
          %s815 = smul.addr %s814, 8
          %s816 = scalar_lea.vmem [#allocation10], %s815
          %817 = dma.done %s813, 128
        $region60: #{tpu_custom_call.1} parent=51 // pred_fallthru
          _
        // Predicated region
        $region61: #{tpu_custom_call.1} parent=51 // pred_check
          %p818 = pneg %p191
        $region62: #{tpu_custom_call.1} parent=51 // pred_check_branch
          %820 = sbr.rel (%p818) target = $region64
        $region63: #{tpu_custom_call.1} parent=51 // pred_region
          %s821 = sand.u32 %s27, 1
          %s822 = scalar_lea.sflag [#allocation11], %s821
          %s823 = sand.u32 %s176, 1
          %s824 = smul.addr %s823, 8
          %s825 = scalar_lea.vmem [#allocation12], %s824
          %826 = dma.done %s822, 128
        $region64: #{tpu_custom_call.1} parent=51 // pred_fallthru
          _
      $region52: #{tpu_custom_call.1} parent=5 // pred_fallthru
        _
    $region6: #{tpu_custom_call.1} parent=1 // loop_footer
      %s25 = sadd.s32 1, %s21
    $region7: #{tpu_custom_call.1} parent=1 // loop_footer_branch
      %20 = sbr.rel target = $region3
    $region8: #{tpu_custom_call.1} parent=1 // loop_exit
      _
    %827 = vsyncpa [#allocation5], 1
    %s828 = scalar_lea.sflag [#allocation5], 1
    %829 = vsyncpa %s828, 1
    %830 = vsyncpa [#allocation8], 1
    %831 = vsyncpa [#allocation6], 1
    %s832 = scalar_lea.sflag [#allocation6], 1
    %833 = vsyncpa %s832, 1
    %834 = vsyncpa [#allocation11], 1
    %s835 = scalar_lea.sflag [#allocation11], 1
    %836 = vsyncpa %s835, 1

</llo_original>
